<compile_context>
chip_gen: v6e
topology: v6e:2x2x1
jax: 0.10.0
libtpu: 0.0.40
codegen_flags: <defaults>
</compile_context>

<pallas_src>
import functools
import math

import numpy as np
import jax
import jax.numpy as jnp
from jax.experimental import pallas as pl
from jax.experimental.pallas import tpu as pltpu

NEG_SLOPE = 0.01          # nn.LeakyReLU default negative_slope
LANE = 128
MAX_BATCH_TILE = 2048     # rows per tile cap (keeps per-tile VMEM ~1-2 MB)


def _round_up(x, m):
    return (x + m - 1) // m * m


def _auto_config():
    """Pick per-generation defaults (epilogue dtype, TC-parallel tile count)."""
    kind = ""
    try:
        kind = jax.devices()[0].device_kind.lower()
    except Exception:
        pass
    is_v7 = "v7" in kind
    has_bf16_vpu = ("v6" in kind) or is_v7        # v5e/v5p/v4: f32 epilogue
    return {
        "parallel_tiles": 2 if is_v7 else 1,       # v7x: 2 TensorCores
        "epilogue_dtype": jnp.bfloat16 if has_bf16_vpu else jnp.float32,
    }


def _mlp_kernel(x_ref, w_ref, b_ref, out_ref, *, n_layers, epilogue_dtype):
    """One batch tile of the padded MLP.

    x_ref  : (TB, F)            bf16 batch tile, features zero-padded to F
    w_ref  : (n_layers, F, F)   bf16 layer weights in (in, out) layout, zero-padded
    b_ref  : (n_layers, F)      f32  layer biases, zero-padded
    out_ref: (TB, F)            f32
    """
    h = x_ref[...]                                   # (TB, F) bf16
    for l in range(n_layers):                        # static, fully unrolled
        # bf16 x bf16 MXU matmul with f32 accumulation.
        acc = jnp.dot(h, w_ref[l], preferred_element_type=jnp.float32)
        b = b_ref[pl.ds(l, 1), :]                    # (1, F) f32, broadcast
        if l < n_layers - 1:
            # LeakyReLU(a<1) == max(x, a*x); Dropout is identity in eval mode.
            a = acc.astype(epilogue_dtype) + b.astype(epilogue_dtype)
            a = jnp.maximum(a, NEG_SLOPE * a)
            h = a.astype(jnp.bfloat16)               # no-op when epilogue is bf16
        else:
            out_ref[...] = acc + b                   # final layer: f32 bias add


def make_user_embedder(weights, biases, *, num_batch_tiles=None,
                       epilogue_dtype=None):
    """Pack parameters once and return (jitted forward(x), config).

    weights[i] : (in_i, out_i)  layer-i weight in (in, out) layout, i.e. h @ W + b
                 (equivalent to PyTorch x @ W.T + b with W of shape (out, in))
    biases[i]  : (out_i,)
    """
    cfg = _auto_config()
    parallel_tiles = cfg["parallel_tiles"]
    ep_dtype = epilogue_dtype if epilogue_dtype is not None else cfg["epilogue_dtype"]

    n_layers = len(weights)
    in_dim = weights[0].shape[0]
    out_dim = weights[-1].shape[1]

    # Common lane-dense feature width (all layer widths zero-padded to F).
    dims = [in_dim] + [w.shape[1] for w in weights]
    F = _round_up(max(dims), LANE)

    # ---- pack parameters ONCE (host-side numpy, single device transfer) ----
    w_np = np.zeros((n_layers, F, F), np.float32)
    b_np = np.zeros((n_layers, F), np.float32)
    for l, (w, b) in enumerate(zip(weights, biases)):
        fi, fo = w.shape
        w_np[l, :fi, :fo] = np.asarray(w, np.float32)
        b_np[l, :fo] = np.asarray(b, np.float32).reshape(fo)
    w_packed = jnp.asarray(w_np, jnp.bfloat16)       # MXU operand dtype
    b_packed = jnp.asarray(b_np, jnp.float32)        # exact f32 bias storage

    kernel = functools.partial(_mlp_kernel, n_layers=n_layers,
                               epilogue_dtype=ep_dtype)

    @jax.jit
    def forward(x):
        B = x.shape[0]
        # Grid length: 1 on single-TC chips, multiple of 2 on v7x (TC balance),
        # growing only if a tile would exceed MAX_BATCH_TILE rows.
        num_tiles = num_batch_tiles
        if num_tiles is None:
            num_tiles = parallel_tiles
            while _round_up(pl.cdiv(B, num_tiles), 8) > MAX_BATCH_TILE:
                num_tiles += parallel_tiles
        TB = _round_up(pl.cdiv(B, num_tiles), 8)
        B_pad = TB * num_tiles

        # Single fused pad + downcast of the input (fuses under jit).
        x_pad = jnp.pad(x.astype(jnp.bfloat16),
                        ((0, B_pad - B), (0, F - in_dim)))

        out_pad = pl.pallas_call(
            kernel,
            out_shape=jax.ShapeDtypeStruct((B_pad, F), jnp.float32),
            grid=(num_tiles,),
            in_specs=[
                pl.BlockSpec((TB, F), lambda i: (i, 0)),              # batch-tiled x
                pl.BlockSpec((n_layers, F, F), lambda i: (0, 0, 0)),  # weights resident
                pl.BlockSpec((n_layers, F), lambda i: (0, 0)),        # biases resident
            ],
            out_specs=pl.BlockSpec((TB, F), lambda i: (i, 0)),
            compiler_params=pltpu.CompilerParams(
                dimension_semantics=("parallel",),    # v7x: shard batch over 2 TCs
            ),
        )(x_pad, w_packed, b_packed)

        # Strip batch + feature padding.
        return out_pad[:B, :out_dim]

    config = {"epilogue_dtype": ep_dtype, "feature_pad": F}
    return forward, config


# ----------------------------------------------------------------------------
# Helpers for the self-test
# ----------------------------------------------------------------------------
def xavier_uniform(key, fan_in, fan_out, dtype=jnp.float32):
    """Match torch.nn.init.xavier_uniform_ (gain=1)."""
    limit = math.sqrt(6.0 / (fan_in + fan_out))
    return jax.random.uniform(key, (fan_in, fan_out), dtype=dtype,
                              minval=-limit, maxval=limit)


def make_params(key, dims):
    """dims: [input_dim, mlp_1..mlp_5, hidden x4, output_dim] -> (weights, biases).

    The PyTorch module zero-inits biases; small random biases here exercise the
    bias-add path (forward semantics are identical for any bias values).
    """
    weights, biases = [], []
    keys = jax.random.split(key, 2 * (len(dims) - 1))
    for i in range(len(dims) - 1):
        fan_in, fan_out = dims[i], dims[i + 1]
        weights.append(xavier_uniform(keys[2 * i], fan_in, fan_out))
        biases.append(0.01 * jax.random.normal(keys[2 * i + 1], (fan_out,),
                                               dtype=jnp.float32))
    return weights, biases


def reference_forward(x, weights, biases, epilogue_dtype):
    """Plain-JAX reference mirroring the kernel's dtype path exactly."""
    # TODO(synk): an all-f32 path (f32 weights + f32 epilogue) can be swapped in
    # if bit-parity with the f32 PyTorch model is required.
    h = x.astype(jnp.bfloat16)
    n = len(weights)
    for i, (w, b) in enumerate(zip(weights, biases)):
        acc = jnp.dot(h, w.astype(jnp.bfloat16),
                      preferred_element_type=jnp.float32)
        b = jnp.asarray(b, jnp.float32).reshape(1, -1)
        if i < n - 1:
            a = acc.astype(epilogue_dtype) + b.astype(epilogue_dtype)
            a = jnp.maximum(a, NEG_SLOPE * a)
            h = a.astype(jnp.bfloat16)
        else:
            h = acc + b
    return h


if __name__ == "__main__":
    # Shapes consistent with UserEmbedder(input_dim, hidden_dim, mlp_1..5,
    # output_dim, dropout).  batch deliberately not a multiple of 8 / of the
    # parallel tile count so the padded-tail path is exercised.
    batch = 173
    input_dim = 32
    mlp_1 = mlp_2 = mlp_3 = mlp_4 = mlp_5 = 64
    hidden_dim = 32
    output_dim = 16

    dims = [input_dim, mlp_1, mlp_2, mlp_3, mlp_4, mlp_5,
            hidden_dim, hidden_dim, hidden_dim, hidden_dim, output_dim]

    key = jax.random.PRNGKey(0)
    kx, kp = jax.random.split(key)
    x = jax.random.normal(kx, (batch, input_dim), dtype=jnp.float32)
    weights, biases = make_params(kp, dims)

    forward, cfg = make_user_embedder(weights, biases)
    out = forward(x)
    out = jax.block_until_ready(out)

    ref = reference_forward(x, weights, biases, cfg["epilogue_dtype"])
    assert out.shape == (batch, output_dim)
    assert jnp.allclose(out, ref, atol=1e-2, rtol=1e-2), "mismatch vs reference"

    print("KERNEL_OK")
</pallas_src>

<mosaic_0001>
module attributes {stable_mosaic.version = 11 : i64} {
  func.func @_mlp_kernel(%arg0: i32, %arg1: memref<176x128xbf16, #tpu.memory_space<vmem>>, %arg2: memref<10x128x128xbf16, #tpu.memory_space<vmem>>, %arg3: memref<10x128xf32, #tpu.memory_space<vmem>>, %arg4: memref<176x128xf32, #tpu.memory_space<vmem>>) attributes {dimension_semantics = [#tpu.dimension_semantics<parallel>], iteration_bounds = array<i64: 1>, scalar_prefetch = 0 : i64, scratch_operands = 0 : i64, tpu.core_type = #tpu.core_type<tc>, window_params = [{transform_indices = @transform_0, window_bounds = array<i64: 176, 128>}, {pipeline_mode = #tpu.pipeline_mode<synchronous>, transform_indices = @transform_1, window_bounds = array<i64: 10, 128, 128>}, {pipeline_mode = #tpu.pipeline_mode<synchronous>, transform_indices = @transform_2, window_bounds = array<i64: 10, 128>}, {transform_indices = @transform_3, window_bounds = array<i64: 176, 128>}]} {
    %c0 = arith.constant 0 : index
    %c0_0 = arith.constant 0 : index
    %0 = vector.load %arg1[%c0, %c0_0] : memref<176x128xbf16, #tpu.memory_space<vmem>>, vector<176x128xbf16>
    %c0_1 = arith.constant 0 : index
    %c0_2 = arith.constant 0 : index
    %c0_3 = arith.constant 0 : index
    %1 = vector.load %arg2[%c0_1, %c0_2, %c0_3] : memref<10x128x128xbf16, #tpu.memory_space<vmem>>, vector<1x128x128xbf16>
    %2 = vector.shape_cast %1 : vector<1x128x128xbf16> to vector<128x128xbf16>
    %cst = arith.constant dense<0.000000e+00> : vector<176x128xf32>
    %3 = tpu.matmul %0, %2, %cst {dimension_numbers = #tpu.dot_dimension_numbers<[1], [0], [0], [1], [0, 0, 1, 1], [], []>} : vector<176x128xbf16>, vector<128x128xbf16>, vector<176x128xf32> -> vector<176x128xf32>
    %c0_4 = arith.constant 0 : index
    %c0_5 = arith.constant 0 : index
    %4 = vector.load %arg3[%c0_4, %c0_5] : memref<10x128xf32, #tpu.memory_space<vmem>>, vector<1x128xf32>
    %5 = vector.broadcast %4 : vector<1x128xf32> to vector<176x128xf32>
    %6 = arith.addf %3, %5 : vector<176x128xf32>
    %cst_6 = arith.constant 0.00999999977 : f32
    %7 = vector.broadcast %cst_6 : f32 to vector<176x128xf32>
    %8 = arith.mulf %7, %6 : vector<176x128xf32>
    %9 = arith.maximumf %6, %8 : vector<176x128xf32>
    %10 = arith.truncf %9 : vector<176x128xf32> to vector<176x128xbf16>
    %c1 = arith.constant 1 : index
    %c0_7 = arith.constant 0 : index
    %c0_8 = arith.constant 0 : index
    %11 = vector.load %arg2[%c1, %c0_7, %c0_8] : memref<10x128x128xbf16, #tpu.memory_space<vmem>>, vector<1x128x128xbf16>
    %12 = vector.shape_cast %11 : vector<1x128x128xbf16> to vector<128x128xbf16>
    %cst_9 = arith.constant dense<0.000000e+00> : vector<176x128xf32>
    %13 = tpu.matmul %10, %12, %cst_9 {dimension_numbers = #tpu.dot_dimension_numbers<[1], [0], [0], [1], [0, 0, 1, 1], [], []>} : vector<176x128xbf16>, vector<128x128xbf16>, vector<176x128xf32> -> vector<176x128xf32>
    %c1_10 = arith.constant 1 : index
    %c0_11 = arith.constant 0 : index
    %14 = vector.load %arg3[%c1_10, %c0_11] : memref<10x128xf32, #tpu.memory_space<vmem>>, vector<1x128xf32>
    %15 = vector.broadcast %14 : vector<1x128xf32> to vector<176x128xf32>
    %16 = arith.addf %13, %15 : vector<176x128xf32>
    %cst_12 = arith.constant 0.00999999977 : f32
    %17 = vector.broadcast %cst_12 : f32 to vector<176x128xf32>
    %18 = arith.mulf %17, %16 : vector<176x128xf32>
    %19 = arith.maximumf %16, %18 : vector<176x128xf32>
    %20 = arith.truncf %19 : vector<176x128xf32> to vector<176x128xbf16>
    %c2 = arith.constant 2 : index
    %c0_13 = arith.constant 0 : index
    %c0_14 = arith.constant 0 : index
    %21 = vector.load %arg2[%c2, %c0_13, %c0_14] : memref<10x128x128xbf16, #tpu.memory_space<vmem>>, vector<1x128x128xbf16>
    %22 = vector.shape_cast %21 : vector<1x128x128xbf16> to vector<128x128xbf16>
    %cst_15 = arith.constant dense<0.000000e+00> : vector<176x128xf32>
    %23 = tpu.matmul %20, %22, %cst_15 {dimension_numbers = #tpu.dot_dimension_numbers<[1], [0], [0], [1], [0, 0, 1, 1], [], []>} : vector<176x128xbf16>, vector<128x128xbf16>, vector<176x128xf32> -> vector<176x128xf32>
    %c2_16 = arith.constant 2 : index
    %c0_17 = arith.constant 0 : index
    %24 = vector.load %arg3[%c2_16, %c0_17] : memref<10x128xf32, #tpu.memory_space<vmem>>, vector<1x128xf32>
    %25 = vector.broadcast %24 : vector<1x128xf32> to vector<176x128xf32>
    %26 = arith.addf %23, %25 : vector<176x128xf32>
    %cst_18 = arith.constant 0.00999999977 : f32
    %27 = vector.broadcast %cst_18 : f32 to vector<176x128xf32>
    %28 = arith.mulf %27, %26 : vector<176x128xf32>
    %29 = arith.maximumf %26, %28 : vector<176x128xf32>
    %30 = arith.truncf %29 : vector<176x128xf32> to vector<176x128xbf16>
    %c3 = arith.constant 3 : index
    %c0_19 = arith.constant 0 : index
    %c0_20 = arith.constant 0 : index
    %31 = vector.load %arg2[%c3, %c0_19, %c0_20] : memref<10x128x128xbf16, #tpu.memory_space<vmem>>, vector<1x128x128xbf16>
    %32 = vector.shape_cast %31 : vector<1x128x128xbf16> to vector<128x128xbf16>
    %cst_21 = arith.constant dense<0.000000e+00> : vector<176x128xf32>
    %33 = tpu.matmul %30, %32, %cst_21 {dimension_numbers = #tpu.dot_dimension_numbers<[1], [0], [0], [1], [0, 0, 1, 1], [], []>} : vector<176x128xbf16>, vector<128x128xbf16>, vector<176x128xf32> -> vector<176x128xf32>
    %c3_22 = arith.constant 3 : index
    %c0_23 = arith.constant 0 : index
    %34 = vector.load %arg3[%c3_22, %c0_23] : memref<10x128xf32, #tpu.memory_space<vmem>>, vector<1x128xf32>
    %35 = vector.broadcast %34 : vector<1x128xf32> to vector<176x128xf32>
    %36 = arith.addf %33, %35 : vector<176x128xf32>
    %cst_24 = arith.constant 0.00999999977 : f32
    %37 = vector.broadcast %cst_24 : f32 to vector<176x128xf32>
    %38 = arith.mulf %37, %36 : vector<176x128xf32>
    %39 = arith.maximumf %36, %38 : vector<176x128xf32>
    %40 = arith.truncf %39 : vector<176x128xf32> to vector<176x128xbf16>
    %c4 = arith.constant 4 : index
    %c0_25 = arith.constant 0 : index
    %c0_26 = arith.constant 0 : index
    %41 = vector.load %arg2[%c4, %c0_25, %c0_26] : memref<10x128x128xbf16, #tpu.memory_space<vmem>>, vector<1x128x128xbf16>
    %42 = vector.shape_cast %41 : vector<1x128x128xbf16> to vector<128x128xbf16>
    %cst_27 = arith.constant dense<0.000000e+00> : vector<176x128xf32>
    %43 = tpu.matmul %40, %42, %cst_27 {dimension_numbers = #tpu.dot_dimension_numbers<[1], [0], [0], [1], [0, 0, 1, 1], [], []>} : vector<176x128xbf16>, vector<128x128xbf16>, vector<176x128xf32> -> vector<176x128xf32>
    %c4_28 = arith.constant 4 : index
    %c0_29 = arith.constant 0 : index
    %44 = vector.load %arg3[%c4_28, %c0_29] : memref<10x128xf32, #tpu.memory_space<vmem>>, vector<1x128xf32>
    %45 = vector.broadcast %44 : vector<1x128xf32> to vector<176x128xf32>
    %46 = arith.addf %43, %45 : vector<176x128xf32>
    %cst_30 = arith.constant 0.00999999977 : f32
    %47 = vector.broadcast %cst_30 : f32 to vector<176x128xf32>
    %48 = arith.mulf %47, %46 : vector<176x128xf32>
    %49 = arith.maximumf %46, %48 : vector<176x128xf32>
    %50 = arith.truncf %49 : vector<176x128xf32> to vector<176x128xbf16>
    %c5 = arith.constant 5 : index
    %c0_31 = arith.constant 0 : index
    %c0_32 = arith.constant 0 : index
    %51 = vector.load %arg2[%c5, %c0_31, %c0_32] : memref<10x128x128xbf16, #tpu.memory_space<vmem>>, vector<1x128x128xbf16>
    %52 = vector.shape_cast %51 : vector<1x128x128xbf16> to vector<128x128xbf16>
    %cst_33 = arith.constant dense<0.000000e+00> : vector<176x128xf32>
    %53 = tpu.matmul %50, %52, %cst_33 {dimension_numbers = #tpu.dot_dimension_numbers<[1], [0], [0], [1], [0, 0, 1, 1], [], []>} : vector<176x128xbf16>, vector<128x128xbf16>, vector<176x128xf32> -> vector<176x128xf32>
    %c5_34 = arith.constant 5 : index
    %c0_35 = arith.constant 0 : index
    %54 = vector.load %arg3[%c5_34, %c0_35] : memref<10x128xf32, #tpu.memory_space<vmem>>, vector<1x128xf32>
    %55 = vector.broadcast %54 : vector<1x128xf32> to vector<176x128xf32>
    %56 = arith.addf %53, %55 : vector<176x128xf32>
    %cst_36 = arith.constant 0.00999999977 : f32
    %57 = vector.broadcast %cst_36 : f32 to vector<176x128xf32>
    %58 = arith.mulf %57, %56 : vector<176x128xf32>
    %59 = arith.maximumf %56, %58 : vector<176x128xf32>
    %60 = arith.truncf %59 : vector<176x128xf32> to vector<176x128xbf16>
    %c6 = arith.constant 6 : index
    %c0_37 = arith.constant 0 : index
    %c0_38 = arith.constant 0 : index
    %61 = vector.load %arg2[%c6, %c0_37, %c0_38] : memref<10x128x128xbf16, #tpu.memory_space<vmem>>, vector<1x128x128xbf16>
    %62 = vector.shape_cast %61 : vector<1x128x128xbf16> to vector<128x128xbf16>
    %cst_39 = arith.constant dense<0.000000e+00> : vector<176x128xf32>
    %63 = tpu.matmul %60, %62, %cst_39 {dimension_numbers = #tpu.dot_dimension_numbers<[1], [0], [0], [1], [0, 0, 1, 1], [], []>} : vector<176x128xbf16>, vector<128x128xbf16>, vector<176x128xf32> -> vector<176x128xf32>
    %c6_40 = arith.constant 6 : index
    %c0_41 = arith.constant 0 : index
    %64 = vector.load %arg3[%c6_40, %c0_41] : memref<10x128xf32, #tpu.memory_space<vmem>>, vector<1x128xf32>
    %65 = vector.broadcast %64 : vector<1x128xf32> to vector<176x128xf32>
    %66 = arith.addf %63, %65 : vector<176x128xf32>
    %cst_42 = arith.constant 0.00999999977 : f32
    %67 = vector.broadcast %cst_42 : f32 to vector<176x128xf32>
    %68 = arith.mulf %67, %66 : vector<176x128xf32>
    %69 = arith.maximumf %66, %68 : vector<176x128xf32>
    %70 = arith.truncf %69 : vector<176x128xf32> to vector<176x128xbf16>
    %c7 = arith.constant 7 : index
    %c0_43 = arith.constant 0 : index
    %c0_44 = arith.constant 0 : index
    %71 = vector.load %arg2[%c7, %c0_43, %c0_44] : memref<10x128x128xbf16, #tpu.memory_space<vmem>>, vector<1x128x128xbf16>
    %72 = vector.shape_cast %71 : vector<1x128x128xbf16> to vector<128x128xbf16>
    %cst_45 = arith.constant dense<0.000000e+00> : vector<176x128xf32>
    %73 = tpu.matmul %70, %72, %cst_45 {dimension_numbers = #tpu.dot_dimension_numbers<[1], [0], [0], [1], [0, 0, 1, 1], [], []>} : vector<176x128xbf16>, vector<128x128xbf16>, vector<176x128xf32> -> vector<176x128xf32>
    %c7_46 = arith.constant 7 : index
    %c0_47 = arith.constant 0 : index
    %74 = vector.load %arg3[%c7_46, %c0_47] : memref<10x128xf32, #tpu.memory_space<vmem>>, vector<1x128xf32>
    %75 = vector.broadcast %74 : vector<1x128xf32> to vector<176x128xf32>
    %76 = arith.addf %73, %75 : vector<176x128xf32>
    %cst_48 = arith.constant 0.00999999977 : f32
    %77 = vector.broadcast %cst_48 : f32 to vector<176x128xf32>
    %78 = arith.mulf %77, %76 : vector<176x128xf32>
    %79 = arith.maximumf %76, %78 : vector<176x128xf32>
    %80 = arith.truncf %79 : vector<176x128xf32> to vector<176x128xbf16>
    %c8 = arith.constant 8 : index
    %c0_49 = arith.constant 0 : index
    %c0_50 = arith.constant 0 : index
    %81 = vector.load %arg2[%c8, %c0_49, %c0_50] : memref<10x128x128xbf16, #tpu.memory_space<vmem>>, vector<1x128x128xbf16>
    %82 = vector.shape_cast %81 : vector<1x128x128xbf16> to vector<128x128xbf16>
    %cst_51 = arith.constant dense<0.000000e+00> : vector<176x128xf32>
    %83 = tpu.matmul %80, %82, %cst_51 {dimension_numbers = #tpu.dot_dimension_numbers<[1], [0], [0], [1], [0, 0, 1, 1], [], []>} : vector<176x128xbf16>, vector<128x128xbf16>, vector<176x128xf32> -> vector<176x128xf32>
    %c8_52 = arith.constant 8 : index
    %c0_53 = arith.constant 0 : index
    %84 = vector.load %arg3[%c8_52, %c0_53] : memref<10x128xf32, #tpu.memory_space<vmem>>, vector<1x128xf32>
    %85 = vector.broadcast %84 : vector<1x128xf32> to vector<176x128xf32>
    %86 = arith.addf %83, %85 : vector<176x128xf32>
    %cst_54 = arith.constant 0.00999999977 : f32
    %87 = vector.broadcast %cst_54 : f32 to vector<176x128xf32>
    %88 = arith.mulf %87, %86 : vector<176x128xf32>
    %89 = arith.maximumf %86, %88 : vector<176x128xf32>
    %90 = arith.truncf %89 : vector<176x128xf32> to vector<176x128xbf16>
    %c9 = arith.constant 9 : index
    %c0_55 = arith.constant 0 : index
    %c0_56 = arith.constant 0 : index
    %91 = vector.load %arg2[%c9, %c0_55, %c0_56] : memref<10x128x128xbf16, #tpu.memory_space<vmem>>, vector<1x128x128xbf16>
    %92 = vector.shape_cast %91 : vector<1x128x128xbf16> to vector<128x128xbf16>
    %cst_57 = arith.constant dense<0.000000e+00> : vector<176x128xf32>
    %93 = tpu.matmul %90, %92, %cst_57 {dimension_numbers = #tpu.dot_dimension_numbers<[1], [0], [0], [1], [0, 0, 1, 1], [], []>} : vector<176x128xbf16>, vector<128x128xbf16>, vector<176x128xf32> -> vector<176x128xf32>
    %c9_58 = arith.constant 9 : index
    %c0_59 = arith.constant 0 : index
    %94 = vector.load %arg3[%c9_58, %c0_59] : memref<10x128xf32, #tpu.memory_space<vmem>>, vector<1x128xf32>
    %95 = vector.broadcast %94 : vector<1x128xf32> to vector<176x128xf32>
    %96 = arith.addf %93, %95 : vector<176x128xf32>
    %c0_60 = arith.constant 0 : index
    %c0_61 = arith.constant 0 : index
    %97 = vector.load %arg4[%c0_60, %c0_61] : memref<176x128xf32, #tpu.memory_space<vmem>>, vector<176x128xf32>
    tpu.vector_store %arg4[%c0_60, %c0_61], %96 {strides = array<i32>} : memref<176x128xf32, #tpu.memory_space<vmem>>, vector<176x128xf32>,
    return
  }
  func.func @transform_0(%arg0: i32) -> (i32, i32) {
    %c0_i32 = arith.constant 0 : i32
    %c0_i32_0 = arith.constant 0 : i32
    return %arg0, %c0_i32 : i32, i32
  }
  func.func @transform_1(%arg0: i32) -> (i32, i32, i32) {
    %c0_i32 = arith.constant 0 : i32
    %c0_i32_0 = arith.constant 0 : i32
    %c0_i32_1 = arith.constant 0 : i32
    %c0_i32_2 = arith.constant 0 : i32
    return %c0_i32, %c0_i32_0, %c0_i32_1 : i32, i32, i32
  }
  func.func @transform_2(%arg0: i32) -> (i32, i32) {
    %c0_i32 = arith.constant 0 : i32
    %c0_i32_0 = arith.constant 0 : i32
    %c0_i32_1 = arith.constant 0 : i32
    return %c0_i32, %c0_i32_0 : i32, i32
  }
  func.func @transform_3(%arg0: i32) -> (i32, i32) {
    %c0_i32 = arith.constant 0 : i32
    %c0_i32_0 = arith.constant 0 : i32
    return %arg0, %c0_i32 : i32, i32
  }
}

</mosaic_0001>

<llo_original>
// kernel: forward.1
$region0: #{forward.1}
  #allocation0 [shape = 'u32[]', space=smem, size = 0x4, offset = 0x4, fixed_abs, tag = 'smem constant byte address 0x4 - core index']
  #allocation1 [shape = 'u32[144,128]{1,0:T(1,128)}', space=vmem, size = 0x12000, scoped, tag = 'internal scratch']
  %s0 = inlined_call_operand.vmem [shape: bf16[176,128], index: 0, kind: input, shape index: {}]
  %s1 = inlined_call_operand.hbm [shape: bf16[10,128,128], index: 1, kind: input, shape index: {}]
  %s2 = inlined_call_operand.vmem [shape: f32[10,128], index: 2, kind: input, shape index: {}]
  %s3 = inlined_call_operand.vmem [shape: f32[176,128], index: 3, kind: output, shape index: {}]
  %s4 = sld [smem:[#allocation0]]
  $region26: #{forward.1} parent=0
    _
  %s6 = ssub.s32 1, %s4
  %s7 = scalar_select 0, %s6, %s4
  $region1: #{forward.1} parent=0
    #allocation2 [shape = 'u8[327680]{0}', space=vmem, size = 0x50000, scoped, tag = 'input window, operand 1, single buffered']
    #allocation3 [shape = 's32[1]{0}', space=sflag, size = 0x4, scoped, tag = 'scoped memory for forward.1']
    %8 = vsyncpa [#allocation3], 0
    // Predicated region
    $region2: #{forward.1} parent=1 // pred_check
      _
    $region3: #{forward.1} parent=1 // pred_check_branch
      %10 = sbr.rel (0) target = $region5
    $region4: #{forward.1} parent=1 // pred_region
      _
    $region5: #{forward.1} parent=1 // pred_fallthru
      _
    // Predicated region
    $region6: #{forward.1} parent=1 // pred_check
      _
    $region7: #{forward.1} parent=1 // pred_check_branch
      %12 = sbr.rel (0) target = $region9
    $region8: #{forward.1} parent=1 // pred_region
      %s14 = ssub.s32 10240, 10240
      %15 = vsyncadd [#allocation3], %s14
      %s16 = sshll.u32 [#allocation2], 4
      %s17 = int_to_ptr.vmem [resolvable:$true] %s16
      %22 = dma.hbm_to_vmem [thread:$0]  %s1, 10240, %s17, [#allocation3], 64, 64, 4
    $region9: #{forward.1} parent=1 // pred_fallthru
      _
    // Predicated region
    $region10: #{forward.1} parent=1 // pred_check
      _
    $region11: #{forward.1} parent=1 // pred_check_branch
      %24 = sbr.rel (0) target = $region13
    $region12: #{forward.1} parent=1 // pred_region
      _
    $region13: #{forward.1} parent=1 // pred_fallthru
      _
    // Predicated region
    $region14: #{forward.1} parent=1 // pred_check
      _
    $region15: #{forward.1} parent=1 // pred_check_branch
      %26 = sbr.rel (0) target = $region17
    $region16: #{forward.1} parent=1 // pred_region
      %27 = dma.done [#allocation3], 10240
    $region17: #{forward.1} parent=1 // pred_fallthru
      _
    %v29 = vld [vmem:[%s0] sm:$0xf]
    %v30 = vld [vmem:[%s0 + $0x4] sm:$0xf]
    %v31 = vld [vmem:[%s0 + $0x8] sm:$0xf]
    %v32 = vld [vmem:[%s0 + $0xc] sm:$0xf]
    %v33 = vld [vmem:[%s0 + $0x10] sm:$0xf]
    %v34 = vld [vmem:[%s0 + $0x14] sm:$0xf]
    %v35 = vld [vmem:[%s0 + $0x18] sm:$0xf]
    %v36 = vld [vmem:[%s0 + $0x1c] sm:$0xf]
    %v37 = vld [vmem:[%s0 + $0x20] sm:$0xf]
    %v38 = vld [vmem:[%s0 + $0x24] sm:$0xf]
    %v39 = vld [vmem:[%s0 + $0x28] sm:$0xf]
    %v40 = vld [vmem:[%s0 + $0x2c] sm:$0xf]
    %v41 = vld [vmem:[%s0 + $0x30] sm:$0xf]
    %v42 = vld [vmem:[%s0 + $0x34] sm:$0xf]
    %v43 = vld [vmem:[%s0 + $0x38] sm:$0xf]
    %v44 = vld [vmem:[%s0 + $0x3c] sm:$0xf]
    %v45 = vld [vmem:[%s0 + $0x40] sm:$0xf]
    %v46 = vld [vmem:[%s0 + $0x44] sm:$0xf]
    %v47 = vld [vmem:[%s0 + $0x48] sm:$0xf]
    %v48 = vld [vmem:[%s0 + $0x4c] sm:$0xf]
    %v49 = vld [vmem:[%s0 + $0x50] sm:$0xf]
    %v50 = vld [vmem:[%s0 + $0x54] sm:$0xf]
    %v51 = vld [vmem:[#allocation2] sm:$0xf]
    %v52 = vld [vmem:[#allocation2 + $0x4] sm:$0xf]
    %v53 = vld [vmem:[#allocation2 + $0x8] sm:$0xf]
    %v54 = vld [vmem:[#allocation2 + $0xc] sm:$0xf]
    %v55 = vld [vmem:[#allocation2 + $0x10] sm:$0xf]
    %v56 = vld [vmem:[#allocation2 + $0x14] sm:$0xf]
    %v57 = vld [vmem:[#allocation2 + $0x18] sm:$0xf]
    %v58 = vld [vmem:[#allocation2 + $0x1c] sm:$0xf]
    %v59 = vld [vmem:[#allocation2 + $0x20] sm:$0xf]
    %v60 = vld [vmem:[#allocation2 + $0x24] sm:$0xf]
    %v61 = vld [vmem:[#allocation2 + $0x28] sm:$0xf]
    %v62 = vld [vmem:[#allocation2 + $0x2c] sm:$0xf]
    %v63 = vld [vmem:[#allocation2 + $0x30] sm:$0xf]
    %v64 = vld [vmem:[#allocation2 + $0x34] sm:$0xf]
    %v65 = vld [vmem:[#allocation2 + $0x38] sm:$0xf]
    %v66 = vld [vmem:[#allocation2 + $0x3c] sm:$0xf]
    %v67 = vld [vmem:[%s2] sm:$0x1]
    %v68 = vlaneseq
    %v69 = vshrl.u32 %v68, 7
    %v70 = vsub.s32 0, %v69
    %v71 = vrot.slane %v67, %v70
    %v94 = vunpack.c.l.b16 %v29
    %v95 = vunpack.c.l.b16 %v30
    %v96 = vunpack.c.l.b16 %v31
    %v97 = vunpack.c.l.b16 %v32
    %v98 = vunpack.c.l.b16 %v33
    %v99 = vunpack.c.l.b16 %v34
    %v100 = vunpack.c.l.b16 %v35
    %v101 = vunpack.c.l.b16 %v36
    %v102 = vunpack.c.l.b16 %v37
    %v103 = vunpack.c.l.b16 %v38
    %v104 = vunpack.c.l.b16 %v39
    %v105 = vunpack.c.l.b16 %v40
    %v106 = vunpack.c.l.b16 %v41
    %v107 = vunpack.c.l.b16 %v42
    %v108 = vunpack.c.l.b16 %v43
    %v109 = vunpack.c.l.b16 %v44
    %v110 = vunpack.c.l.b16 %v45
    %v111 = vunpack.c.l.b16 %v46
    %v112 = vunpack.c.l.b16 %v47
    %v113 = vunpack.c.l.b16 %v48
    %v114 = vunpack.c.l.b16 %v49
    %v115 = vunpack.c.l.b16 %v50
    %v116 = vpack.c.b16 %v95, %v94
    %v117 = vpack.c.b16 %v97, %v96
    %v118 = vpack.c.b16 %v99, %v98
    %v119 = vpack.c.b16 %v101, %v100
    %v120 = vpack.c.b16 %v103, %v102
    %v121 = vpack.c.b16 %v105, %v104
    %v122 = vpack.c.b16 %v107, %v106
    %v123 = vpack.c.b16 %v109, %v108
    %v124 = vpack.c.b16 %v111, %v110
    %v125 = vpack.c.b16 %v113, %v112
    %v126 = vpack.c.b16 %v115, %v114
    %v154 = vunpack.c.l.b16 %v51
    %v155 = vunpack.c.l.b16 %v52
    %v156 = vunpack.c.l.b16 %v53
    %v157 = vunpack.c.l.b16 %v54
    %v158 = vunpack.c.l.b16 %v55
    %v159 = vunpack.c.l.b16 %v56
    %v160 = vunpack.c.l.b16 %v57
    %v161 = vunpack.c.l.b16 %v58
    %v162 = vunpack.c.l.b16 %v59
    %v163 = vunpack.c.l.b16 %v60
    %v164 = vunpack.c.l.b16 %v61
    %v165 = vunpack.c.l.b16 %v62
    %v166 = vunpack.c.l.b16 %v63
    %v167 = vunpack.c.l.b16 %v64
    %v168 = vunpack.c.l.b16 %v65
    %v169 = vunpack.c.l.b16 %v66
    %v170 = vpack.c.b16 %v155, %v154
    %v171 = vpack.c.b16 %v157, %v156
    %v172 = vpack.c.b16 %v159, %v158
    %v173 = vpack.c.b16 %v161, %v160
    %v174 = vpack.c.b16 %v163, %v162
    %v175 = vpack.c.b16 %v165, %v164
    %v176 = vpack.c.b16 %v167, %v166
    %v177 = vpack.c.b16 %v169, %v168
    %186 = vmatprep.subr.bf16.mxu0 0
    %187 = vmatpush1.bf16.msra.mxu0 %v177
    %188 = vmatprep.subr.bf16.mxu0 0
    %189 = vmatpush1.bf16.msra.mxu0 %v176
    %190 = vmatprep.subr.bf16.mxu0 0
    %191 = vmatpush1.bf16.msra.mxu0 %v175
    %192 = vmatprep.subr.bf16.mxu0 0
    %193 = vmatpush1.bf16.msra.mxu0 %v174
    %194 = vmatprep.subr.bf16.mxu0 0
    %195 = vmatpush1.bf16.msra.mxu0 %v173
    %196 = vmatprep.subr.bf16.mxu0 0
    %197 = vmatpush1.bf16.msra.mxu0 %v172
    %198 = vmatprep.subr.bf16.mxu0 0
    %199 = vmatpush1.bf16.msra.mxu0 %v171
    %200 = vmatprep.subr.bf16.mxu0 0
    %201 = vmatpush1.bf16.msra.mxu0 %v170
    %202 = vmatprep.subr.bf16.mxu0 0
    %203 = vmatpush2.bf16.msra.mxu0 0
    %204 = vmatprep.subr.bf16.mxu0 0
    %205 = vmatpush2.bf16.msra.mxu0 0
    %206 = vmatprep.subr.bf16.mxu0 0
    %207 = vmatpush2.bf16.msra.mxu0 0
    %208 = vmatprep.subr.bf16.mxu0 0
    %209 = vmatpush2.bf16.msra.mxu0 0
    %210 = vmatprep.subr.bf16.mxu0 0
    %211 = vmatpush2.bf16.msra.mxu0 0
    %212 = vmatprep.subr.bf16.mxu0 0
    %213 = vmatpush2.bf16.msra.mxu0 0
    %214 = vmatprep.subr.bf16.mxu0 0
    %215 = vmatpush2.bf16.msra.mxu0 0
    %216 = vmatprep.subr.bf16.mxu0 0
    %217 = vmatpush2.bf16.msra.mxu0 0
    %218 = vmatprep.mubr.bf16.mxu0 0
    %219 = vmatmul.mubr.bf16.gmra.mxu0 %v116
    %v220 = vpop.f32.mrf.mxu0
    %v221 = vadd.f32 %v71, %v220
    %v222 = vpop.f32.mrf.mxu0
    %v223 = vpop.f32.mrf.mxu0
    %v224 = vadd.f32 %v71, %v223
    %v225 = vpop.f32.mrf.mxu0
    %226 = vmatprep.mubr.bf16.mxu0 0
    %227 = vmatmul.mubr.bf16.gmra.mxu0 %v117
    %v228 = vpop.f32.mrf.mxu0
    %v229 = vadd.f32 %v71, %v228
    %v230 = vpop.f32.mrf.mxu0
    %v231 = vpop.f32.mrf.mxu0
    %v232 = vadd.f32 %v71, %v231
    %v233 = vpop.f32.mrf.mxu0
    %234 = vmatprep.mubr.bf16.mxu0 0
    %235 = vmatmul.mubr.bf16.gmra.mxu0 %v118
    %v236 = vpop.f32.mrf.mxu0
    %v237 = vadd.f32 %v71, %v236
    %v238 = vpop.f32.mrf.mxu0
    %v239 = vpop.f32.mrf.mxu0
    %v240 = vadd.f32 %v71, %v239
    %v241 = vpop.f32.mrf.mxu0
    %242 = vmatprep.mubr.bf16.mxu0 0
    %243 = vmatmul.mubr.bf16.gmra.mxu0 %v119
    %v244 = vpop.f32.mrf.mxu0
    %v245 = vadd.f32 %v71, %v244
    %v246 = vpop.f32.mrf.mxu0
    %v247 = vpop.f32.mrf.mxu0
    %v248 = vadd.f32 %v71, %v247
    %v249 = vpop.f32.mrf.mxu0
    %250 = vmatprep.mubr.bf16.mxu0 0
    %251 = vmatmul.mubr.bf16.gmra.mxu0 %v120
    %v252 = vpop.f32.mrf.mxu0
    %v253 = vadd.f32 %v71, %v252
    %v254 = vpop.f32.mrf.mxu0
    %v255 = vpop.f32.mrf.mxu0
    %v256 = vadd.f32 %v71, %v255
    %v257 = vpop.f32.mrf.mxu0
    %258 = vmatprep.mubr.bf16.mxu0 0
    %259 = vmatmul.mubr.bf16.gmra.mxu0 %v121
    %v260 = vpop.f32.mrf.mxu0
    %v261 = vadd.f32 %v71, %v260
    %v262 = vpop.f32.mrf.mxu0
    %v263 = vpop.f32.mrf.mxu0
    %v264 = vadd.f32 %v71, %v263
    %v265 = vpop.f32.mrf.mxu0
    %266 = vmatprep.mubr.bf16.mxu0 0
    %267 = vmatmul.mubr.bf16.gmra.mxu0 %v122
    %v268 = vpop.f32.mrf.mxu0
    %v269 = vadd.f32 %v71, %v268
    %v270 = vpop.f32.mrf.mxu0
    %v271 = vpop.f32.mrf.mxu0
    %v272 = vadd.f32 %v71, %v271
    %v273 = vpop.f32.mrf.mxu0
    %274 = vmatprep.mubr.bf16.mxu0 0
    %275 = vmatmul.mubr.bf16.gmra.mxu0 %v123
    %v276 = vpop.f32.mrf.mxu0
    %v277 = vadd.f32 %v71, %v276
    %v278 = vpop.f32.mrf.mxu0
    %v279 = vpop.f32.mrf.mxu0
    %v280 = vadd.f32 %v71, %v279
    %v281 = vpop.f32.mrf.mxu0
    %282 = vmatprep.mubr.bf16.mxu0 0
    %283 = vmatmul.mubr.bf16.gmra.mxu0 %v124
    %v284 = vpop.f32.mrf.mxu0
    %v285 = vadd.f32 %v71, %v284
    %v286 = vpop.f32.mrf.mxu0
    %v287 = vpop.f32.mrf.mxu0
    %v288 = vadd.f32 %v71, %v287
    %v289 = vpop.f32.mrf.mxu0
    %290 = vmatprep.mubr.bf16.mxu0 0
    %291 = vmatmul.mubr.bf16.gmra.mxu0 %v125
    %v292 = vpop.f32.mrf.mxu0
    %v293 = vadd.f32 %v71, %v292
    %v294 = vpop.f32.mrf.mxu0
    %v295 = vpop.f32.mrf.mxu0
    %v296 = vadd.f32 %v71, %v295
    %v297 = vpop.f32.mrf.mxu0
    %298 = vmatprep.mubr.bf16.mxu0 0
    %299 = vmatmul.mubr.bf16.gmra.mxu0 %v126
    %v300 = vpop.f32.mrf.mxu0
    %v301 = vadd.f32 %v71, %v300
    %v302 = vpop.f32.mrf.mxu0
    %v303 = vpop.f32.mrf.mxu0
    %v304 = vadd.f32 %v71, %v303
    %v305 = vpop.f32.mrf.mxu0
    %306 = vdwg.mxu0
    %v307 = vmul.f32 %v221, 0.01
    %v308 = vmul.f32 %v224, 0.01
    %v309 = vmul.f32 %v229, 0.01
    %v310 = vmul.f32 %v232, 0.01
    %v311 = vmul.f32 %v237, 0.01
    %v312 = vmul.f32 %v240, 0.01
    %v313 = vmul.f32 %v245, 0.01
    %v314 = vmul.f32 %v248, 0.01
    %v315 = vmul.f32 %v253, 0.01
    %v316 = vmul.f32 %v256, 0.01
    %v317 = vmul.f32 %v261, 0.01
    %v318 = vmul.f32 %v264, 0.01
    %v319 = vmul.f32 %v269, 0.01
    %v320 = vmul.f32 %v272, 0.01
    %v321 = vmul.f32 %v277, 0.01
    %v322 = vmul.f32 %v280, 0.01
    %v323 = vmul.f32 %v285, 0.01
    %v324 = vmul.f32 %v288, 0.01
    %v325 = vmul.f32 %v293, 0.01
    %v326 = vmul.f32 %v296, 0.01
    %v327 = vmul.f32 %v301, 0.01
    %v328 = vmul.f32 %v304, 0.01
    %v329 = vmax.f32 %v221, %v307
    %v330 = vmax.f32 %v224, %v308
    %v331 = vmax.f32 %v229, %v309
    %v332 = vmax.f32 %v232, %v310
    %v333 = vmax.f32 %v237, %v311
    %v334 = vmax.f32 %v240, %v312
    %v335 = vmax.f32 %v245, %v313
    %v336 = vmax.f32 %v248, %v314
    %v337 = vmax.f32 %v253, %v315
    %v338 = vmax.f32 %v256, %v316
    %v339 = vmax.f32 %v261, %v317
    %v340 = vmax.f32 %v264, %v318
    %v341 = vmax.f32 %v269, %v319
    %v342 = vmax.f32 %v272, %v320
    %v343 = vmax.f32 %v277, %v321
    %v344 = vmax.f32 %v280, %v322
    %v345 = vmax.f32 %v285, %v323
    %v346 = vmax.f32 %v288, %v324
    %v347 = vmax.f32 %v293, %v325
    %v348 = vmax.f32 %v296, %v326
    %v349 = vmax.f32 %v301, %v327
    %v350 = vmax.f32 %v304, %v328
    %v351 = vpack.c.bf16 %v330, %v329
    %v352 = vpack.c.bf16 %v332, %v331
    %v353 = vpack.c.bf16 %v334, %v333
    %v354 = vpack.c.bf16 %v336, %v335
    %v355 = vpack.c.bf16 %v338, %v337
    %v356 = vpack.c.bf16 %v340, %v339
    %v357 = vpack.c.bf16 %v342, %v341
    %v358 = vpack.c.bf16 %v344, %v343
    %v359 = vpack.c.bf16 %v346, %v345
    %v360 = vpack.c.bf16 %v348, %v347
    %v361 = vpack.c.bf16 %v350, %v349
    %s362 = scalar_lea.vmem [#allocation2], 64
    %v363 = vld [vmem:[%s362] sm:$0xf]
    %v364 = vld [vmem:[%s362 + $0x4] sm:$0xf]
    %v365 = vld [vmem:[%s362 + $0x8] sm:$0xf]
    %v366 = vld [vmem:[%s362 + $0xc] sm:$0xf]
    %v367 = vld [vmem:[%s362 + $0x10] sm:$0xf]
    %v368 = vld [vmem:[%s362 + $0x14] sm:$0xf]
    %v369 = vld [vmem:[%s362 + $0x18] sm:$0xf]
    %v370 = vld [vmem:[%s362 + $0x1c] sm:$0xf]
    %v371 = vld [vmem:[%s362 + $0x20] sm:$0xf]
    %v372 = vld [vmem:[%s362 + $0x24] sm:$0xf]
    %v373 = vld [vmem:[%s362 + $0x28] sm:$0xf]
    %v374 = vld [vmem:[%s362 + $0x2c] sm:$0xf]
    %v375 = vld [vmem:[%s362 + $0x30] sm:$0xf]
    %v376 = vld [vmem:[%s362 + $0x34] sm:$0xf]
    %v377 = vld [vmem:[%s362 + $0x38] sm:$0xf]
    %v378 = vld [vmem:[%s362 + $0x3c] sm:$0xf]
    %v379 = vld [vmem:[%s2 + $0x1] sm:$0x1]
    %v380 = vlaneseq
    %v381 = vshrl.u32 %v380, 7
    %v382 = vsub.s32 0, %v381
    %v383 = vrot.slane %v379, %v382
    %v400 = vunpack.c.l.b16 %v363
    %v401 = vunpack.c.l.b16 %v364
    %v402 = vunpack.c.l.b16 %v365
    %v403 = vunpack.c.l.b16 %v366
    %v404 = vunpack.c.l.b16 %v367
    %v405 = vunpack.c.l.b16 %v368
    %v406 = vunpack.c.l.b16 %v369
    %v407 = vunpack.c.l.b16 %v370
    %v408 = vunpack.c.l.b16 %v371
    %v409 = vunpack.c.l.b16 %v372
    %v410 = vunpack.c.l.b16 %v373
    %v411 = vunpack.c.l.b16 %v374
    %v412 = vunpack.c.l.b16 %v375
    %v413 = vunpack.c.l.b16 %v376
    %v414 = vunpack.c.l.b16 %v377
    %v415 = vunpack.c.l.b16 %v378
    %v416 = vpack.c.b16 %v401, %v400
    %v417 = vpack.c.b16 %v403, %v402
    %v418 = vpack.c.b16 %v405, %v404
    %v419 = vpack.c.b16 %v407, %v406
    %v420 = vpack.c.b16 %v409, %v408
    %v421 = vpack.c.b16 %v411, %v410
    %v422 = vpack.c.b16 %v413, %v412
    %v423 = vpack.c.b16 %v415, %v414
    %432 = vmatprep.subr.bf16.mxu0 0
    %433 = vmatpush1.bf16.msra.mxu0 %v423
    %434 = vmatprep.subr.bf16.mxu0 0
    %435 = vmatpush1.bf16.msra.mxu0 %v422
    %436 = vmatprep.subr.bf16.mxu0 0
    %437 = vmatpush1.bf16.msra.mxu0 %v421
    %438 = vmatprep.subr.bf16.mxu0 0
    %439 = vmatpush1.bf16.msra.mxu0 %v420
    %440 = vmatprep.subr.bf16.mxu0 0
    %441 = vmatpush1.bf16.msra.mxu0 %v419
    %442 = vmatprep.subr.bf16.mxu0 0
    %443 = vmatpush1.bf16.msra.mxu0 %v418
    %444 = vmatprep.subr.bf16.mxu0 0
    %445 = vmatpush1.bf16.msra.mxu0 %v417
    %446 = vmatprep.subr.bf16.mxu0 0
    %447 = vmatpush1.bf16.msra.mxu0 %v416
    %448 = vmatprep.subr.bf16.mxu0 0
    %449 = vmatpush2.bf16.msra.mxu0 0
    %450 = vmatprep.subr.bf16.mxu0 0
    %451 = vmatpush2.bf16.msra.mxu0 0
    %452 = vmatprep.subr.bf16.mxu0 0
    %453 = vmatpush2.bf16.msra.mxu0 0
    %454 = vmatprep.subr.bf16.mxu0 0
    %455 = vmatpush2.bf16.msra.mxu0 0
    %456 = vmatprep.subr.bf16.mxu0 0
    %457 = vmatpush2.bf16.msra.mxu0 0
    %458 = vmatprep.subr.bf16.mxu0 0
    %459 = vmatpush2.bf16.msra.mxu0 0
    %460 = vmatprep.subr.bf16.mxu0 0
    %461 = vmatpush2.bf16.msra.mxu0 0
    %462 = vmatprep.subr.bf16.mxu0 0
    %463 = vmatpush2.bf16.msra.mxu0 0
    %464 = vmatprep.mubr.bf16.mxu0 0
    %465 = vmatmul.mubr.bf16.gmra.mxu0 %v351
    %v466 = vpop.f32.mrf.mxu0
    %v467 = vadd.f32 %v383, %v466
    %v468 = vpop.f32.mrf.mxu0
    %v469 = vpop.f32.mrf.mxu0
    %v470 = vadd.f32 %v383, %v469
    %v471 = vpop.f32.mrf.mxu0
    %472 = vmatprep.mubr.bf16.mxu0 0
    %473 = vmatmul.mubr.bf16.gmra.mxu0 %v352
    %v474 = vpop.f32.mrf.mxu0
    %v475 = vadd.f32 %v383, %v474
    %v476 = vpop.f32.mrf.mxu0
    %v477 = vpop.f32.mrf.mxu0
    %v478 = vadd.f32 %v383, %v477
    %v479 = vpop.f32.mrf.mxu0
    %480 = vmatprep.mubr.bf16.mxu0 0
    %481 = vmatmul.mubr.bf16.gmra.mxu0 %v353
    %v482 = vpop.f32.mrf.mxu0
    %v483 = vadd.f32 %v383, %v482
    %v484 = vpop.f32.mrf.mxu0
    %v485 = vpop.f32.mrf.mxu0
    %v486 = vadd.f32 %v383, %v485
    %v487 = vpop.f32.mrf.mxu0
    %488 = vmatprep.mubr.bf16.mxu0 0
    %489 = vmatmul.mubr.bf16.gmra.mxu0 %v354
    %v490 = vpop.f32.mrf.mxu0
    %v491 = vadd.f32 %v383, %v490
    %v492 = vpop.f32.mrf.mxu0
    %v493 = vpop.f32.mrf.mxu0
    %v494 = vadd.f32 %v383, %v493
    %v495 = vpop.f32.mrf.mxu0
    %496 = vmatprep.mubr.bf16.mxu0 0
    %497 = vmatmul.mubr.bf16.gmra.mxu0 %v355
    %v498 = vpop.f32.mrf.mxu0
    %v499 = vadd.f32 %v383, %v498
    %v500 = vpop.f32.mrf.mxu0
    %v501 = vpop.f32.mrf.mxu0
    %v502 = vadd.f32 %v383, %v501
    %v503 = vpop.f32.mrf.mxu0
    %504 = vmatprep.mubr.bf16.mxu0 0
    %505 = vmatmul.mubr.bf16.gmra.mxu0 %v356
    %v506 = vpop.f32.mrf.mxu0
    %v507 = vadd.f32 %v383, %v506
    %v508 = vpop.f32.mrf.mxu0
    %v509 = vpop.f32.mrf.mxu0
    %v510 = vadd.f32 %v383, %v509
    %v511 = vpop.f32.mrf.mxu0
    %512 = vmatprep.mubr.bf16.mxu0 0
    %513 = vmatmul.mubr.bf16.gmra.mxu0 %v357
    %v514 = vpop.f32.mrf.mxu0
    %v515 = vadd.f32 %v383, %v514
    %v516 = vpop.f32.mrf.mxu0
    %v517 = vpop.f32.mrf.mxu0
    %v518 = vadd.f32 %v383, %v517
    %v519 = vpop.f32.mrf.mxu0
    %520 = vmatprep.mubr.bf16.mxu0 0
    %521 = vmatmul.mubr.bf16.gmra.mxu0 %v358
    %v522 = vpop.f32.mrf.mxu0
    %v523 = vadd.f32 %v383, %v522
    %v524 = vpop.f32.mrf.mxu0
    %v525 = vpop.f32.mrf.mxu0
    %v526 = vadd.f32 %v383, %v525
    %v527 = vpop.f32.mrf.mxu0
    %528 = vmatprep.mubr.bf16.mxu0 0
    %529 = vmatmul.mubr.bf16.gmra.mxu0 %v359
    %v530 = vpop.f32.mrf.mxu0
    %v531 = vadd.f32 %v383, %v530
    %v532 = vpop.f32.mrf.mxu0
    %v533 = vpop.f32.mrf.mxu0
    %v534 = vadd.f32 %v383, %v533
    %v535 = vpop.f32.mrf.mxu0
    %536 = vmatprep.mubr.bf16.mxu0 0
    %537 = vmatmul.mubr.bf16.gmra.mxu0 %v360
    %v538 = vpop.f32.mrf.mxu0
    %v539 = vadd.f32 %v383, %v538
    %v540 = vpop.f32.mrf.mxu0
    %v541 = vpop.f32.mrf.mxu0
    %v542 = vadd.f32 %v383, %v541
    %v543 = vpop.f32.mrf.mxu0
    %544 = vmatprep.mubr.bf16.mxu0 0
    %545 = vmatmul.mubr.bf16.gmra.mxu0 %v361
    %v546 = vpop.f32.mrf.mxu0
    %v547 = vadd.f32 %v383, %v546
    %v548 = vpop.f32.mrf.mxu0
    %v549 = vpop.f32.mrf.mxu0
    %v550 = vadd.f32 %v383, %v549
    %v551 = vpop.f32.mrf.mxu0
    %552 = vdwg.mxu0
    %v553 = vmul.f32 %v467, 0.01
    %v554 = vmul.f32 %v470, 0.01
    %v555 = vmul.f32 %v475, 0.01
    %v556 = vmul.f32 %v478, 0.01
    %v557 = vmul.f32 %v483, 0.01
    %v558 = vmul.f32 %v486, 0.01
    %v559 = vmul.f32 %v491, 0.01
    %v560 = vmul.f32 %v494, 0.01
    %v561 = vmul.f32 %v499, 0.01
    %v562 = vmul.f32 %v502, 0.01
    %v563 = vmul.f32 %v507, 0.01
    %v564 = vmul.f32 %v510, 0.01
    %v565 = vmul.f32 %v515, 0.01
    %v566 = vmul.f32 %v518, 0.01
    %v567 = vmul.f32 %v523, 0.01
    %v568 = vmul.f32 %v526, 0.01
    %v569 = vmul.f32 %v531, 0.01
    %v570 = vmul.f32 %v534, 0.01
    %v571 = vmul.f32 %v539, 0.01
    %v572 = vmul.f32 %v542, 0.01
    %v573 = vmul.f32 %v547, 0.01
    %v574 = vmul.f32 %v550, 0.01
    %v575 = vmax.f32 %v467, %v553
    %v576 = vmax.f32 %v470, %v554
    %v577 = vmax.f32 %v475, %v555
    %v578 = vmax.f32 %v478, %v556
    %v579 = vmax.f32 %v483, %v557
    %v580 = vmax.f32 %v486, %v558
    %v581 = vmax.f32 %v491, %v559
    %v582 = vmax.f32 %v494, %v560
    %v583 = vmax.f32 %v499, %v561
    %v584 = vmax.f32 %v502, %v562
    %v585 = vmax.f32 %v507, %v563
    %v586 = vmax.f32 %v510, %v564
    %v587 = vmax.f32 %v515, %v565
    %v588 = vmax.f32 %v518, %v566
    %v589 = vmax.f32 %v523, %v567
    %v590 = vmax.f32 %v526, %v568
    %v591 = vmax.f32 %v531, %v569
    %v592 = vmax.f32 %v534, %v570
    %v593 = vmax.f32 %v539, %v571
    %v594 = vmax.f32 %v542, %v572
    %v595 = vmax.f32 %v547, %v573
    %v596 = vmax.f32 %v550, %v574
    %v597 = vpack.c.bf16 %v576, %v575
    %v598 = vpack.c.bf16 %v578, %v577
    %v599 = vpack.c.bf16 %v580, %v579
    %v600 = vpack.c.bf16 %v582, %v581
    %v601 = vpack.c.bf16 %v584, %v583
    %v602 = vpack.c.bf16 %v586, %v585
    %v603 = vpack.c.bf16 %v588, %v587
    %v604 = vpack.c.bf16 %v590, %v589
    %v605 = vpack.c.bf16 %v592, %v591
    %v606 = vpack.c.bf16 %v594, %v593
    %v607 = vpack.c.bf16 %v596, %v595
    %s608 = scalar_lea.vmem [#allocation2], 128
    %v609 = vld [vmem:[%s608] sm:$0xf]
    %v610 = vld [vmem:[%s608 + $0x4] sm:$0xf]
    %v611 = vld [vmem:[%s608 + $0x8] sm:$0xf]
    %v612 = vld [vmem:[%s608 + $0xc] sm:$0xf]
    %v613 = vld [vmem:[%s608 + $0x10] sm:$0xf]
    %v614 = vld [vmem:[%s608 + $0x14] sm:$0xf]
    %v615 = vld [vmem:[%s608 + $0x18] sm:$0xf]
    %v616 = vld [vmem:[%s608 + $0x1c] sm:$0xf]
    %v617 = vld [vmem:[%s608 + $0x20] sm:$0xf]
    %v618 = vld [vmem:[%s608 + $0x24] sm:$0xf]
    %v619 = vld [vmem:[%s608 + $0x28] sm:$0xf]
    %v620 = vld [vmem:[%s608 + $0x2c] sm:$0xf]
    %v621 = vld [vmem:[%s608 + $0x30] sm:$0xf]
    %v622 = vld [vmem:[%s608 + $0x34] sm:$0xf]
    %v623 = vld [vmem:[%s608 + $0x38] sm:$0xf]
    %v624 = vld [vmem:[%s608 + $0x3c] sm:$0xf]
    %v625 = vld [vmem:[%s2 + $0x2] sm:$0x1]
    %v626 = vlaneseq
    %v627 = vshrl.u32 %v626, 7
    %v628 = vsub.s32 0, %v627
    %v629 = vrot.slane %v625, %v628
    %v646 = vunpack.c.l.b16 %v609
    %v647 = vunpack.c.l.b16 %v610
    %v648 = vunpack.c.l.b16 %v611
    %v649 = vunpack.c.l.b16 %v612
    %v650 = vunpack.c.l.b16 %v613
    %v651 = vunpack.c.l.b16 %v614
    %v652 = vunpack.c.l.b16 %v615
    %v653 = vunpack.c.l.b16 %v616
    %v654 = vunpack.c.l.b16 %v617
    %v655 = vunpack.c.l.b16 %v618
    %v656 = vunpack.c.l.b16 %v619
    %v657 = vunpack.c.l.b16 %v620
    %v658 = vunpack.c.l.b16 %v621
    %v659 = vunpack.c.l.b16 %v622
    %v660 = vunpack.c.l.b16 %v623
    %v661 = vunpack.c.l.b16 %v624
    %v662 = vpack.c.b16 %v647, %v646
    %v663 = vpack.c.b16 %v649, %v648
    %v664 = vpack.c.b16 %v651, %v650
    %v665 = vpack.c.b16 %v653, %v652
    %v666 = vpack.c.b16 %v655, %v654
    %v667 = vpack.c.b16 %v657, %v656
    %v668 = vpack.c.b16 %v659, %v658
    %v669 = vpack.c.b16 %v661, %v660
    %678 = vmatprep.subr.bf16.mxu0 0
    %679 = vmatpush1.bf16.msra.mxu0 %v669
    %680 = vmatprep.subr.bf16.mxu0 0
    %681 = vmatpush1.bf16.msra.mxu0 %v668
    %682 = vmatprep.subr.bf16.mxu0 0
    %683 = vmatpush1.bf16.msra.mxu0 %v667
    %684 = vmatprep.subr.bf16.mxu0 0
    %685 = vmatpush1.bf16.msra.mxu0 %v666
    %686 = vmatprep.subr.bf16.mxu0 0
    %687 = vmatpush1.bf16.msra.mxu0 %v665
    %688 = vmatprep.subr.bf16.mxu0 0
    %689 = vmatpush1.bf16.msra.mxu0 %v664
    %690 = vmatprep.subr.bf16.mxu0 0
    %691 = vmatpush1.bf16.msra.mxu0 %v663
    %692 = vmatprep.subr.bf16.mxu0 0
    %693 = vmatpush1.bf16.msra.mxu0 %v662
    %694 = vmatprep.subr.bf16.mxu0 0
    %695 = vmatpush2.bf16.msra.mxu0 0
    %696 = vmatprep.subr.bf16.mxu0 0
    %697 = vmatpush2.bf16.msra.mxu0 0
    %698 = vmatprep.subr.bf16.mxu0 0
    %699 = vmatpush2.bf16.msra.mxu0 0
    %700 = vmatprep.subr.bf16.mxu0 0
    %701 = vmatpush2.bf16.msra.mxu0 0
    %702 = vmatprep.subr.bf16.mxu0 0
    %703 = vmatpush2.bf16.msra.mxu0 0
    %704 = vmatprep.subr.bf16.mxu0 0
    %705 = vmatpush2.bf16.msra.mxu0 0
    %706 = vmatprep.subr.bf16.mxu0 0
    %707 = vmatpush2.bf16.msra.mxu0 0
    %708 = vmatprep.subr.bf16.mxu0 0
    %709 = vmatpush2.bf16.msra.mxu0 0
    %710 = vmatprep.mubr.bf16.mxu0 0
    %711 = vmatmul.mubr.bf16.gmra.mxu0 %v597
    %v712 = vpop.f32.mrf.mxu0
    %v713 = vadd.f32 %v629, %v712
    %v714 = vpop.f32.mrf.mxu0
    %v715 = vpop.f32.mrf.mxu0
    %v716 = vadd.f32 %v629, %v715
    %v717 = vpop.f32.mrf.mxu0
    %718 = vmatprep.mubr.bf16.mxu0 0
    %719 = vmatmul.mubr.bf16.gmra.mxu0 %v598
    %v720 = vpop.f32.mrf.mxu0
    %v721 = vadd.f32 %v629, %v720
    %v722 = vpop.f32.mrf.mxu0
    %v723 = vpop.f32.mrf.mxu0
    %v724 = vadd.f32 %v629, %v723
    %v725 = vpop.f32.mrf.mxu0
    %726 = vmatprep.mubr.bf16.mxu0 0
    %727 = vmatmul.mubr.bf16.gmra.mxu0 %v599
    %v728 = vpop.f32.mrf.mxu0
    %v729 = vadd.f32 %v629, %v728
    %v730 = vpop.f32.mrf.mxu0
    %v731 = vpop.f32.mrf.mxu0
    %v732 = vadd.f32 %v629, %v731
    %v733 = vpop.f32.mrf.mxu0
    %734 = vmatprep.mubr.bf16.mxu0 0
    %735 = vmatmul.mubr.bf16.gmra.mxu0 %v600
    %v736 = vpop.f32.mrf.mxu0
    %v737 = vadd.f32 %v629, %v736
    %v738 = vpop.f32.mrf.mxu0
    %v739 = vpop.f32.mrf.mxu0
    %v740 = vadd.f32 %v629, %v739
    %v741 = vpop.f32.mrf.mxu0
    %742 = vmatprep.mubr.bf16.mxu0 0
    %743 = vmatmul.mubr.bf16.gmra.mxu0 %v601
    %v744 = vpop.f32.mrf.mxu0
    %v745 = vadd.f32 %v629, %v744
    %v746 = vpop.f32.mrf.mxu0
    %v747 = vpop.f32.mrf.mxu0
    %v748 = vadd.f32 %v629, %v747
    %v749 = vpop.f32.mrf.mxu0
    %750 = vmatprep.mubr.bf16.mxu0 0
    %751 = vmatmul.mubr.bf16.gmra.mxu0 %v602
    %v752 = vpop.f32.mrf.mxu0
    %v753 = vadd.f32 %v629, %v752
    %v754 = vpop.f32.mrf.mxu0
    %v755 = vpop.f32.mrf.mxu0
    %v756 = vadd.f32 %v629, %v755
    %v757 = vpop.f32.mrf.mxu0
    %758 = vmatprep.mubr.bf16.mxu0 0
    %759 = vmatmul.mubr.bf16.gmra.mxu0 %v603
    %v760 = vpop.f32.mrf.mxu0
    %v761 = vadd.f32 %v629, %v760
    %v762 = vpop.f32.mrf.mxu0
    %v763 = vpop.f32.mrf.mxu0
    %v764 = vadd.f32 %v629, %v763
    %v765 = vpop.f32.mrf.mxu0
    %766 = vmatprep.mubr.bf16.mxu0 0
    %767 = vmatmul.mubr.bf16.gmra.mxu0 %v604
    %v768 = vpop.f32.mrf.mxu0
    %v769 = vadd.f32 %v629, %v768
    %v770 = vpop.f32.mrf.mxu0
    %v771 = vpop.f32.mrf.mxu0
    %v772 = vadd.f32 %v629, %v771
    %v773 = vpop.f32.mrf.mxu0
    %774 = vmatprep.mubr.bf16.mxu0 0
    %775 = vmatmul.mubr.bf16.gmra.mxu0 %v605
    %v776 = vpop.f32.mrf.mxu0
    %v777 = vadd.f32 %v629, %v776
    %v778 = vpop.f32.mrf.mxu0
    %v779 = vpop.f32.mrf.mxu0
    %v780 = vadd.f32 %v629, %v779
    %v781 = vpop.f32.mrf.mxu0
    %782 = vmatprep.mubr.bf16.mxu0 0
    %783 = vmatmul.mubr.bf16.gmra.mxu0 %v606
    %v784 = vpop.f32.mrf.mxu0
    %v785 = vadd.f32 %v629, %v784
    %v786 = vpop.f32.mrf.mxu0
    %v787 = vpop.f32.mrf.mxu0
    %v788 = vadd.f32 %v629, %v787
    %v789 = vpop.f32.mrf.mxu0
    %790 = vmatprep.mubr.bf16.mxu0 0
    %791 = vmatmul.mubr.bf16.gmra.mxu0 %v607
    %v792 = vpop.f32.mrf.mxu0
    %v793 = vadd.f32 %v629, %v792
    %v794 = vpop.f32.mrf.mxu0
    %v795 = vpop.f32.mrf.mxu0
    %v796 = vadd.f32 %v629, %v795
    %v797 = vpop.f32.mrf.mxu0
    %798 = vdwg.mxu0
    %v799 = vmul.f32 %v713, 0.01
    %v800 = vmul.f32 %v716, 0.01
    %v801 = vmul.f32 %v721, 0.01
    %v802 = vmul.f32 %v724, 0.01
    %v803 = vmul.f32 %v729, 0.01
    %v804 = vmul.f32 %v732, 0.01
    %v805 = vmul.f32 %v737, 0.01
    %v806 = vmul.f32 %v740, 0.01
    %v807 = vmul.f32 %v745, 0.01
    %v808 = vmul.f32 %v748, 0.01
    %v809 = vmul.f32 %v753, 0.01
    %v810 = vmul.f32 %v756, 0.01
    %v811 = vmul.f32 %v761, 0.01
    %v812 = vmul.f32 %v764, 0.01
    %v813 = vmul.f32 %v769, 0.01
    %v814 = vmul.f32 %v772, 0.01
    %v815 = vmul.f32 %v777, 0.01
    %v816 = vmul.f32 %v780, 0.01
    %v817 = vmul.f32 %v785, 0.01
    %v818 = vmul.f32 %v788, 0.01
    %v819 = vmul.f32 %v793, 0.01
    %v820 = vmul.f32 %v796, 0.01
    %v821 = vmax.f32 %v713, %v799
    %v822 = vmax.f32 %v716, %v800
    %v823 = vmax.f32 %v721, %v801
    %v824 = vmax.f32 %v724, %v802
    %v825 = vmax.f32 %v729, %v803
    %v826 = vmax.f32 %v732, %v804
    %v827 = vmax.f32 %v737, %v805
    %v828 = vmax.f32 %v740, %v806
    %v829 = vmax.f32 %v745, %v807
    %v830 = vmax.f32 %v748, %v808
    %v831 = vmax.f32 %v753, %v809
    %v832 = vmax.f32 %v756, %v810
    %v833 = vmax.f32 %v761, %v811
    %v834 = vmax.f32 %v764, %v812
    %v835 = vmax.f32 %v769, %v813
    %v836 = vmax.f32 %v772, %v814
    %v837 = vmax.f32 %v777, %v815
    %v838 = vmax.f32 %v780, %v816
    %v839 = vmax.f32 %v785, %v817
    %v840 = vmax.f32 %v788, %v818
    %v841 = vmax.f32 %v793, %v819
    %v842 = vmax.f32 %v796, %v820
    %v843 = vpack.c.bf16 %v822, %v821
    %v844 = vpack.c.bf16 %v824, %v823
    %v845 = vpack.c.bf16 %v826, %v825
    %v846 = vpack.c.bf16 %v828, %v827
    %v847 = vpack.c.bf16 %v830, %v829
    %v848 = vpack.c.bf16 %v832, %v831
    %v849 = vpack.c.bf16 %v834, %v833
    %v850 = vpack.c.bf16 %v836, %v835
    %v851 = vpack.c.bf16 %v838, %v837
    %v852 = vpack.c.bf16 %v840, %v839
    %v853 = vpack.c.bf16 %v842, %v841
    %s854 = scalar_lea.vmem [#allocation2], 192
    %v855 = vld [vmem:[%s854] sm:$0xf]
    %v856 = vld [vmem:[%s854 + $0x4] sm:$0xf]
    %v857 = vld [vmem:[%s854 + $0x8] sm:$0xf]
    %v858 = vld [vmem:[%s854 + $0xc] sm:$0xf]
    %v859 = vld [vmem:[%s854 + $0x10] sm:$0xf]
    %v860 = vld [vmem:[%s854 + $0x14] sm:$0xf]
    %v861 = vld [vmem:[%s854 + $0x18] sm:$0xf]
    %v862 = vld [vmem:[%s854 + $0x1c] sm:$0xf]
    %v863 = vld [vmem:[%s854 + $0x20] sm:$0xf]
    %v864 = vld [vmem:[%s854 + $0x24] sm:$0xf]
    %v865 = vld [vmem:[%s854 + $0x28] sm:$0xf]
    %v866 = vld [vmem:[%s854 + $0x2c] sm:$0xf]
    %v867 = vld [vmem:[%s854 + $0x30] sm:$0xf]
    %v868 = vld [vmem:[%s854 + $0x34] sm:$0xf]
    %v869 = vld [vmem:[%s854 + $0x38] sm:$0xf]
    %v870 = vld [vmem:[%s854 + $0x3c] sm:$0xf]
    %v871 = vld [vmem:[%s2 + $0x3] sm:$0x1]
    %v872 = vlaneseq
    %v873 = vshrl.u32 %v872, 7
    %v874 = vsub.s32 0, %v873
    %v875 = vrot.slane %v871, %v874
    %v892 = vunpack.c.l.b16 %v855
    %v893 = vunpack.c.l.b16 %v856
    %v894 = vunpack.c.l.b16 %v857
    %v895 = vunpack.c.l.b16 %v858
    %v896 = vunpack.c.l.b16 %v859
    %v897 = vunpack.c.l.b16 %v860
    %v898 = vunpack.c.l.b16 %v861
    %v899 = vunpack.c.l.b16 %v862
    %v900 = vunpack.c.l.b16 %v863
    %v901 = vunpack.c.l.b16 %v864
    %v902 = vunpack.c.l.b16 %v865
    %v903 = vunpack.c.l.b16 %v866
    %v904 = vunpack.c.l.b16 %v867
    %v905 = vunpack.c.l.b16 %v868
    %v906 = vunpack.c.l.b16 %v869
    %v907 = vunpack.c.l.b16 %v870
    %v908 = vpack.c.b16 %v893, %v892
    %v909 = vpack.c.b16 %v895, %v894
    %v910 = vpack.c.b16 %v897, %v896
    %v911 = vpack.c.b16 %v899, %v898
    %v912 = vpack.c.b16 %v901, %v900
    %v913 = vpack.c.b16 %v903, %v902
    %v914 = vpack.c.b16 %v905, %v904
    %v915 = vpack.c.b16 %v907, %v906
    %924 = vmatprep.subr.bf16.mxu0 0
    %925 = vmatpush1.bf16.msra.mxu0 %v915
    %926 = vmatprep.subr.bf16.mxu0 0
    %927 = vmatpush1.bf16.msra.mxu0 %v914
    %928 = vmatprep.subr.bf16.mxu0 0
    %929 = vmatpush1.bf16.msra.mxu0 %v913
    %930 = vmatprep.subr.bf16.mxu0 0
    %931 = vmatpush1.bf16.msra.mxu0 %v912
    %932 = vmatprep.subr.bf16.mxu0 0
    %933 = vmatpush1.bf16.msra.mxu0 %v911
    %934 = vmatprep.subr.bf16.mxu0 0
    %935 = vmatpush1.bf16.msra.mxu0 %v910
    %936 = vmatprep.subr.bf16.mxu0 0
    %937 = vmatpush1.bf16.msra.mxu0 %v909
    %938 = vmatprep.subr.bf16.mxu0 0
    %939 = vmatpush1.bf16.msra.mxu0 %v908
    %940 = vmatprep.subr.bf16.mxu0 0
    %941 = vmatpush2.bf16.msra.mxu0 0
    %942 = vmatprep.subr.bf16.mxu0 0
    %943 = vmatpush2.bf16.msra.mxu0 0
    %944 = vmatprep.subr.bf16.mxu0 0
    %945 = vmatpush2.bf16.msra.mxu0 0
    %946 = vmatprep.subr.bf16.mxu0 0
    %947 = vmatpush2.bf16.msra.mxu0 0
    %948 = vmatprep.subr.bf16.mxu0 0
    %949 = vmatpush2.bf16.msra.mxu0 0
    %950 = vmatprep.subr.bf16.mxu0 0
    %951 = vmatpush2.bf16.msra.mxu0 0
    %952 = vmatprep.subr.bf16.mxu0 0
    %953 = vmatpush2.bf16.msra.mxu0 0
    %954 = vmatprep.subr.bf16.mxu0 0
    %955 = vmatpush2.bf16.msra.mxu0 0
    %956 = vmatprep.mubr.bf16.mxu0 0
    %957 = vmatmul.mubr.bf16.gmra.mxu0 %v843
    %v958 = vpop.f32.mrf.mxu0
    %v959 = vadd.f32 %v875, %v958
    %v960 = vpop.f32.mrf.mxu0
    %v961 = vpop.f32.mrf.mxu0
    %v962 = vadd.f32 %v875, %v961
    %v963 = vpop.f32.mrf.mxu0
    %964 = vmatprep.mubr.bf16.mxu0 0
    %965 = vmatmul.mubr.bf16.gmra.mxu0 %v844
    %v966 = vpop.f32.mrf.mxu0
    %v967 = vadd.f32 %v875, %v966
    %v968 = vpop.f32.mrf.mxu0
    %v969 = vpop.f32.mrf.mxu0
    %v970 = vadd.f32 %v875, %v969
    %v971 = vpop.f32.mrf.mxu0
    %972 = vmatprep.mubr.bf16.mxu0 0
    %973 = vmatmul.mubr.bf16.gmra.mxu0 %v845
    %v974 = vpop.f32.mrf.mxu0
    %v975 = vadd.f32 %v875, %v974
    %v976 = vpop.f32.mrf.mxu0
    %v977 = vpop.f32.mrf.mxu0
    %v978 = vadd.f32 %v875, %v977
    %v979 = vpop.f32.mrf.mxu0
    %980 = vmatprep.mubr.bf16.mxu0 0
    %981 = vmatmul.mubr.bf16.gmra.mxu0 %v846
    %v982 = vpop.f32.mrf.mxu0
    %v983 = vadd.f32 %v875, %v982
    %v984 = vpop.f32.mrf.mxu0
    %v985 = vpop.f32.mrf.mxu0
    %v986 = vadd.f32 %v875, %v985
    %v987 = vpop.f32.mrf.mxu0
    %988 = vmatprep.mubr.bf16.mxu0 0
    %989 = vmatmul.mubr.bf16.gmra.mxu0 %v847
    %v990 = vpop.f32.mrf.mxu0
    %v991 = vadd.f32 %v875, %v990
    %v992 = vpop.f32.mrf.mxu0
    %v993 = vpop.f32.mrf.mxu0
    %v994 = vadd.f32 %v875, %v993
    %v995 = vpop.f32.mrf.mxu0
    %996 = vmatprep.mubr.bf16.mxu0 0
    %997 = vmatmul.mubr.bf16.gmra.mxu0 %v848
    %v998 = vpop.f32.mrf.mxu0
    %v999 = vadd.f32 %v875, %v998
    %v1000 = vpop.f32.mrf.mxu0
    %v1001 = vpop.f32.mrf.mxu0
    %v1002 = vadd.f32 %v875, %v1001
    %v1003 = vpop.f32.mrf.mxu0
    %1004 = vmatprep.mubr.bf16.mxu0 0
    %1005 = vmatmul.mubr.bf16.gmra.mxu0 %v849
    %v1006 = vpop.f32.mrf.mxu0
    %v1007 = vadd.f32 %v875, %v1006
    %v1008 = vpop.f32.mrf.mxu0
    %v1009 = vpop.f32.mrf.mxu0
    %v1010 = vadd.f32 %v875, %v1009
    %v1011 = vpop.f32.mrf.mxu0
    %1012 = vmatprep.mubr.bf16.mxu0 0
    %1013 = vmatmul.mubr.bf16.gmra.mxu0 %v850
    %v1014 = vpop.f32.mrf.mxu0
    %v1015 = vadd.f32 %v875, %v1014
    %v1016 = vpop.f32.mrf.mxu0
    %v1017 = vpop.f32.mrf.mxu0
    %v1018 = vadd.f32 %v875, %v1017
    %v1019 = vpop.f32.mrf.mxu0
    %1020 = vmatprep.mubr.bf16.mxu0 0
    %1021 = vmatmul.mubr.bf16.gmra.mxu0 %v851
    %v1022 = vpop.f32.mrf.mxu0
    %v1023 = vadd.f32 %v875, %v1022
    %v1024 = vpop.f32.mrf.mxu0
    %v1025 = vpop.f32.mrf.mxu0
    %v1026 = vadd.f32 %v875, %v1025
    %v1027 = vpop.f32.mrf.mxu0
    %1028 = vmatprep.mubr.bf16.mxu0 0
    %1029 = vmatmul.mubr.bf16.gmra.mxu0 %v852
    %v1030 = vpop.f32.mrf.mxu0
    %v1031 = vadd.f32 %v875, %v1030
    %v1032 = vpop.f32.mrf.mxu0
    %v1033 = vpop.f32.mrf.mxu0
    %v1034 = vadd.f32 %v875, %v1033
    %v1035 = vpop.f32.mrf.mxu0
    %1036 = vmatprep.mubr.bf16.mxu0 0
    %1037 = vmatmul.mubr.bf16.gmra.mxu0 %v853
    %v1038 = vpop.f32.mrf.mxu0
    %v1039 = vadd.f32 %v875, %v1038
    %v1040 = vpop.f32.mrf.mxu0
    %v1041 = vpop.f32.mrf.mxu0
    %v1042 = vadd.f32 %v875, %v1041
    %v1043 = vpop.f32.mrf.mxu0
    %1044 = vdwg.mxu0
    %v1045 = vmul.f32 %v959, 0.01
    %v1046 = vmul.f32 %v962, 0.01
    %v1047 = vmul.f32 %v967, 0.01
    %v1048 = vmul.f32 %v970, 0.01
    %v1049 = vmul.f32 %v975, 0.01
    %v1050 = vmul.f32 %v978, 0.01
    %v1051 = vmul.f32 %v983, 0.01
    %v1052 = vmul.f32 %v986, 0.01
    %v1053 = vmul.f32 %v991, 0.01
    %v1054 = vmul.f32 %v994, 0.01
    %v1055 = vmul.f32 %v999, 0.01
    %v1056 = vmul.f32 %v1002, 0.01
    %v1057 = vmul.f32 %v1007, 0.01
    %v1058 = vmul.f32 %v1010, 0.01
    %v1059 = vmul.f32 %v1015, 0.01
    %v1060 = vmul.f32 %v1018, 0.01
    %v1061 = vmul.f32 %v1023, 0.01
    %v1062 = vmul.f32 %v1026, 0.01
    %v1063 = vmul.f32 %v1031, 0.01
    %v1064 = vmul.f32 %v1034, 0.01
    %v1065 = vmul.f32 %v1039, 0.01
    %v1066 = vmul.f32 %v1042, 0.01
    %v1067 = vmax.f32 %v959, %v1045
    %v1068 = vmax.f32 %v962, %v1046
    %v1069 = vmax.f32 %v967, %v1047
    %v1070 = vmax.f32 %v970, %v1048
    %v1071 = vmax.f32 %v975, %v1049
    %v1072 = vmax.f32 %v978, %v1050
    %v1073 = vmax.f32 %v983, %v1051
    %v1074 = vmax.f32 %v986, %v1052
    %v1075 = vmax.f32 %v991, %v1053
    %v1076 = vmax.f32 %v994, %v1054
    %v1077 = vmax.f32 %v999, %v1055
    %v1078 = vmax.f32 %v1002, %v1056
    %v1079 = vmax.f32 %v1007, %v1057
    %v1080 = vmax.f32 %v1010, %v1058
    %v1081 = vmax.f32 %v1015, %v1059
    %v1082 = vmax.f32 %v1018, %v1060
    %v1083 = vmax.f32 %v1023, %v1061
    %v1084 = vmax.f32 %v1026, %v1062
    %v1085 = vmax.f32 %v1031, %v1063
    %v1086 = vmax.f32 %v1034, %v1064
    %v1087 = vmax.f32 %v1039, %v1065
    %v1088 = vmax.f32 %v1042, %v1066
    %v1089 = vpack.c.bf16 %v1068, %v1067
    %v1090 = vpack.c.bf16 %v1070, %v1069
    %v1091 = vpack.c.bf16 %v1072, %v1071
    %v1092 = vpack.c.bf16 %v1074, %v1073
    %v1093 = vpack.c.bf16 %v1076, %v1075
    %v1094 = vpack.c.bf16 %v1078, %v1077
    %v1095 = vpack.c.bf16 %v1080, %v1079
    %v1096 = vpack.c.bf16 %v1082, %v1081
    %v1097 = vpack.c.bf16 %v1084, %v1083
    %v1098 = vpack.c.bf16 %v1086, %v1085
    %v1099 = vpack.c.bf16 %v1088, %v1087
    %s1100 = scalar_lea.vmem [#allocation2], 256
    %v1101 = vld [vmem:[%s1100] sm:$0xf]
    %v1102 = vld [vmem:[%s1100 + $0x4] sm:$0xf]
    %v1103 = vld [vmem:[%s1100 + $0x8] sm:$0xf]
    %v1104 = vld [vmem:[%s1100 + $0xc] sm:$0xf]
    %v1105 = vld [vmem:[%s1100 + $0x10] sm:$0xf]
    %v1106 = vld [vmem:[%s1100 + $0x14] sm:$0xf]
    %v1107 = vld [vmem:[%s1100 + $0x18] sm:$0xf]
    %v1108 = vld [vmem:[%s1100 + $0x1c] sm:$0xf]
    %v1109 = vld [vmem:[%s1100 + $0x20] sm:$0xf]
    %v1110 = vld [vmem:[%s1100 + $0x24] sm:$0xf]
    %v1111 = vld [vmem:[%s1100 + $0x28] sm:$0xf]
    %v1112 = vld [vmem:[%s1100 + $0x2c] sm:$0xf]
    %v1113 = vld [vmem:[%s1100 + $0x30] sm:$0xf]
    %v1114 = vld [vmem:[%s1100 + $0x34] sm:$0xf]
    %v1115 = vld [vmem:[%s1100 + $0x38] sm:$0xf]
    %v1116 = vld [vmem:[%s1100 + $0x3c] sm:$0xf]
    %v1117 = vld [vmem:[%s2 + $0x4] sm:$0x1]
    %v1118 = vlaneseq
    %v1119 = vshrl.u32 %v1118, 7
    %v1120 = vsub.s32 0, %v1119
    %v1121 = vrot.slane %v1117, %v1120
    %v1138 = vunpack.c.l.b16 %v1101
    %v1139 = vunpack.c.l.b16 %v1102
    %v1140 = vunpack.c.l.b16 %v1103
    %v1141 = vunpack.c.l.b16 %v1104
    %v1142 = vunpack.c.l.b16 %v1105
    %v1143 = vunpack.c.l.b16 %v1106
    %v1144 = vunpack.c.l.b16 %v1107
    %v1145 = vunpack.c.l.b16 %v1108
    %v1146 = vunpack.c.l.b16 %v1109
    %v1147 = vunpack.c.l.b16 %v1110
    %v1148 = vunpack.c.l.b16 %v1111
    %v1149 = vunpack.c.l.b16 %v1112
    %v1150 = vunpack.c.l.b16 %v1113
    %v1151 = vunpack.c.l.b16 %v1114
    %v1152 = vunpack.c.l.b16 %v1115
    %v1153 = vunpack.c.l.b16 %v1116
    %v1154 = vpack.c.b16 %v1139, %v1138
    %v1155 = vpack.c.b16 %v1141, %v1140
    %v1156 = vpack.c.b16 %v1143, %v1142
    %v1157 = vpack.c.b16 %v1145, %v1144
    %v1158 = vpack.c.b16 %v1147, %v1146
    %v1159 = vpack.c.b16 %v1149, %v1148
    %v1160 = vpack.c.b16 %v1151, %v1150
    %v1161 = vpack.c.b16 %v1153, %v1152
    %1170 = vmatprep.subr.bf16.mxu0 0
    %1171 = vmatpush1.bf16.msra.mxu0 %v1161
    %1172 = vmatprep.subr.bf16.mxu0 0
    %1173 = vmatpush1.bf16.msra.mxu0 %v1160
    %1174 = vmatprep.subr.bf16.mxu0 0
    %1175 = vmatpush1.bf16.msra.mxu0 %v1159
    %1176 = vmatprep.subr.bf16.mxu0 0
    %1177 = vmatpush1.bf16.msra.mxu0 %v1158
    %1178 = vmatprep.subr.bf16.mxu0 0
    %1179 = vmatpush1.bf16.msra.mxu0 %v1157
    %1180 = vmatprep.subr.bf16.mxu0 0
    %1181 = vmatpush1.bf16.msra.mxu0 %v1156
    %1182 = vmatprep.subr.bf16.mxu0 0
    %1183 = vmatpush1.bf16.msra.mxu0 %v1155
    %1184 = vmatprep.subr.bf16.mxu0 0
    %1185 = vmatpush1.bf16.msra.mxu0 %v1154
    %1186 = vmatprep.subr.bf16.mxu0 0
    %1187 = vmatpush2.bf16.msra.mxu0 0
    %1188 = vmatprep.subr.bf16.mxu0 0
    %1189 = vmatpush2.bf16.msra.mxu0 0
    %1190 = vmatprep.subr.bf16.mxu0 0
    %1191 = vmatpush2.bf16.msra.mxu0 0
    %1192 = vmatprep.subr.bf16.mxu0 0
    %1193 = vmatpush2.bf16.msra.mxu0 0
    %1194 = vmatprep.subr.bf16.mxu0 0
    %1195 = vmatpush2.bf16.msra.mxu0 0
    %1196 = vmatprep.subr.bf16.mxu0 0
    %1197 = vmatpush2.bf16.msra.mxu0 0
    %1198 = vmatprep.subr.bf16.mxu0 0
    %1199 = vmatpush2.bf16.msra.mxu0 0
    %1200 = vmatprep.subr.bf16.mxu0 0
    %1201 = vmatpush2.bf16.msra.mxu0 0
    %1202 = vmatprep.mubr.bf16.mxu0 0
    %1203 = vmatmul.mubr.bf16.gmra.mxu0 %v1089
    %v1204 = vpop.f32.mrf.mxu0
    %v1205 = vadd.f32 %v1121, %v1204
    %v1206 = vpop.f32.mrf.mxu0
    %v1207 = vpop.f32.mrf.mxu0
    %v1208 = vadd.f32 %v1121, %v1207
    %v1209 = vpop.f32.mrf.mxu0
    %1210 = vmatprep.mubr.bf16.mxu0 0
    %1211 = vmatmul.mubr.bf16.gmra.mxu0 %v1090
    %v1212 = vpop.f32.mrf.mxu0
    %v1213 = vadd.f32 %v1121, %v1212
    %v1214 = vpop.f32.mrf.mxu0
    %v1215 = vpop.f32.mrf.mxu0
    %v1216 = vadd.f32 %v1121, %v1215
    %v1217 = vpop.f32.mrf.mxu0
    %1218 = vmatprep.mubr.bf16.mxu0 0
    %1219 = vmatmul.mubr.bf16.gmra.mxu0 %v1091
    %v1220 = vpop.f32.mrf.mxu0
    %v1221 = vadd.f32 %v1121, %v1220
    %v1222 = vpop.f32.mrf.mxu0
    %v1223 = vpop.f32.mrf.mxu0
    %v1224 = vadd.f32 %v1121, %v1223
    %v1225 = vpop.f32.mrf.mxu0
    %1226 = vmatprep.mubr.bf16.mxu0 0
    %1227 = vmatmul.mubr.bf16.gmra.mxu0 %v1092
    %v1228 = vpop.f32.mrf.mxu0
    %v1229 = vadd.f32 %v1121, %v1228
    %v1230 = vpop.f32.mrf.mxu0
    %v1231 = vpop.f32.mrf.mxu0
    %v1232 = vadd.f32 %v1121, %v1231
    %v1233 = vpop.f32.mrf.mxu0
    %1234 = vmatprep.mubr.bf16.mxu0 0
    %1235 = vmatmul.mubr.bf16.gmra.mxu0 %v1093
    %v1236 = vpop.f32.mrf.mxu0
    %v1237 = vadd.f32 %v1121, %v1236
    %v1238 = vpop.f32.mrf.mxu0
    %v1239 = vpop.f32.mrf.mxu0
    %v1240 = vadd.f32 %v1121, %v1239
    %v1241 = vpop.f32.mrf.mxu0
    %1242 = vmatprep.mubr.bf16.mxu0 0
    %1243 = vmatmul.mubr.bf16.gmra.mxu0 %v1094
    %v1244 = vpop.f32.mrf.mxu0
    %v1245 = vadd.f32 %v1121, %v1244
    %v1246 = vpop.f32.mrf.mxu0
    %v1247 = vpop.f32.mrf.mxu0
    %v1248 = vadd.f32 %v1121, %v1247
    %v1249 = vpop.f32.mrf.mxu0
    %1250 = vmatprep.mubr.bf16.mxu0 0
    %1251 = vmatmul.mubr.bf16.gmra.mxu0 %v1095
    %v1252 = vpop.f32.mrf.mxu0
    %v1253 = vadd.f32 %v1121, %v1252
    %v1254 = vpop.f32.mrf.mxu0
    %v1255 = vpop.f32.mrf.mxu0
    %v1256 = vadd.f32 %v1121, %v1255
    %v1257 = vpop.f32.mrf.mxu0
    %1258 = vmatprep.mubr.bf16.mxu0 0
    %1259 = vmatmul.mubr.bf16.gmra.mxu0 %v1096
    %v1260 = vpop.f32.mrf.mxu0
    %v1261 = vadd.f32 %v1121, %v1260
    %v1262 = vpop.f32.mrf.mxu0
    %v1263 = vpop.f32.mrf.mxu0
    %v1264 = vadd.f32 %v1121, %v1263
    %v1265 = vpop.f32.mrf.mxu0
    %1266 = vmatprep.mubr.bf16.mxu0 0
    %1267 = vmatmul.mubr.bf16.gmra.mxu0 %v1097
    %v1268 = vpop.f32.mrf.mxu0
    %v1269 = vadd.f32 %v1121, %v1268
    %v1270 = vpop.f32.mrf.mxu0
    %v1271 = vpop.f32.mrf.mxu0
    %v1272 = vadd.f32 %v1121, %v1271
    %v1273 = vpop.f32.mrf.mxu0
    %1274 = vmatprep.mubr.bf16.mxu0 0
    %1275 = vmatmul.mubr.bf16.gmra.mxu0 %v1098
    %v1276 = vpop.f32.mrf.mxu0
    %v1277 = vadd.f32 %v1121, %v1276
    %v1278 = vpop.f32.mrf.mxu0
    %v1279 = vpop.f32.mrf.mxu0
    %v1280 = vadd.f32 %v1121, %v1279
    %v1281 = vpop.f32.mrf.mxu0
    %1282 = vmatprep.mubr.bf16.mxu0 0
    %1283 = vmatmul.mubr.bf16.gmra.mxu0 %v1099
    %v1284 = vpop.f32.mrf.mxu0
    %v1285 = vadd.f32 %v1121, %v1284
    %v1286 = vpop.f32.mrf.mxu0
    %v1287 = vpop.f32.mrf.mxu0
    %v1288 = vadd.f32 %v1121, %v1287
    %v1289 = vpop.f32.mrf.mxu0
    %1290 = vdwg.mxu0
    %v1291 = vmul.f32 %v1205, 0.01
    %v1292 = vmul.f32 %v1208, 0.01
    %v1293 = vmul.f32 %v1213, 0.01
    %v1294 = vmul.f32 %v1216, 0.01
    %v1295 = vmul.f32 %v1221, 0.01
    %v1296 = vmul.f32 %v1224, 0.01
    %v1297 = vmul.f32 %v1229, 0.01
    %v1298 = vmul.f32 %v1232, 0.01
    %v1299 = vmul.f32 %v1237, 0.01
    %v1300 = vmul.f32 %v1240, 0.01
    %v1301 = vmul.f32 %v1245, 0.01
    %v1302 = vmul.f32 %v1248, 0.01
    %v1303 = vmul.f32 %v1253, 0.01
    %v1304 = vmul.f32 %v1256, 0.01
    %v1305 = vmul.f32 %v1261, 0.01
    %v1306 = vmul.f32 %v1264, 0.01
    %v1307 = vmul.f32 %v1269, 0.01
    %v1308 = vmul.f32 %v1272, 0.01
    %v1309 = vmul.f32 %v1277, 0.01
    %v1310 = vmul.f32 %v1280, 0.01
    %v1311 = vmul.f32 %v1285, 0.01
    %v1312 = vmul.f32 %v1288, 0.01
    %v1313 = vmax.f32 %v1205, %v1291
    %v1314 = vmax.f32 %v1208, %v1292
    %v1315 = vmax.f32 %v1213, %v1293
    %v1316 = vmax.f32 %v1216, %v1294
    %v1317 = vmax.f32 %v1221, %v1295
    %v1318 = vmax.f32 %v1224, %v1296
    %v1319 = vmax.f32 %v1229, %v1297
    %v1320 = vmax.f32 %v1232, %v1298
    %v1321 = vmax.f32 %v1237, %v1299
    %v1322 = vmax.f32 %v1240, %v1300
    %v1323 = vmax.f32 %v1245, %v1301
    %v1324 = vmax.f32 %v1248, %v1302
    %v1325 = vmax.f32 %v1253, %v1303
    %v1326 = vmax.f32 %v1256, %v1304
    %v1327 = vmax.f32 %v1261, %v1305
    %v1328 = vmax.f32 %v1264, %v1306
    %v1329 = vmax.f32 %v1269, %v1307
    %v1330 = vmax.f32 %v1272, %v1308
    %v1331 = vmax.f32 %v1277, %v1309
    %v1332 = vmax.f32 %v1280, %v1310
    %v1333 = vmax.f32 %v1285, %v1311
    %v1334 = vmax.f32 %v1288, %v1312
    %v1335 = vpack.c.bf16 %v1314, %v1313
    %v1336 = vpack.c.bf16 %v1316, %v1315
    %v1337 = vpack.c.bf16 %v1318, %v1317
    %v1338 = vpack.c.bf16 %v1320, %v1319
    %v1339 = vpack.c.bf16 %v1322, %v1321
    %v1340 = vpack.c.bf16 %v1324, %v1323
    %v1341 = vpack.c.bf16 %v1326, %v1325
    %v1342 = vpack.c.bf16 %v1328, %v1327
    %v1343 = vpack.c.bf16 %v1330, %v1329
    %v1344 = vpack.c.bf16 %v1332, %v1331
    %v1345 = vpack.c.bf16 %v1334, %v1333
    %s1346 = scalar_lea.vmem [#allocation2], 320
    %v1347 = vld [vmem:[%s1346] sm:$0xf]
    %v1348 = vld [vmem:[%s1346 + $0x4] sm:$0xf]
    %v1349 = vld [vmem:[%s1346 + $0x8] sm:$0xf]
    %v1350 = vld [vmem:[%s1346 + $0xc] sm:$0xf]
    %v1351 = vld [vmem:[%s1346 + $0x10] sm:$0xf]
    %v1352 = vld [vmem:[%s1346 + $0x14] sm:$0xf]
    %v1353 = vld [vmem:[%s1346 + $0x18] sm:$0xf]
    %v1354 = vld [vmem:[%s1346 + $0x1c] sm:$0xf]
    %v1355 = vld [vmem:[%s1346 + $0x20] sm:$0xf]
    %v1356 = vld [vmem:[%s1346 + $0x24] sm:$0xf]
    %v1357 = vld [vmem:[%s1346 + $0x28] sm:$0xf]
    %v1358 = vld [vmem:[%s1346 + $0x2c] sm:$0xf]
    %v1359 = vld [vmem:[%s1346 + $0x30] sm:$0xf]
    %v1360 = vld [vmem:[%s1346 + $0x34] sm:$0xf]
    %v1361 = vld [vmem:[%s1346 + $0x38] sm:$0xf]
    %v1362 = vld [vmem:[%s1346 + $0x3c] sm:$0xf]
    %v1363 = vld [vmem:[%s2 + $0x5] sm:$0x1]
    %v1364 = vlaneseq
    %v1365 = vshrl.u32 %v1364, 7
    %v1366 = vsub.s32 0, %v1365
    %v1367 = vrot.slane %v1363, %v1366
    %v1384 = vunpack.c.l.b16 %v1347
    %v1385 = vunpack.c.l.b16 %v1348
    %v1386 = vunpack.c.l.b16 %v1349
    %v1387 = vunpack.c.l.b16 %v1350
    %v1388 = vunpack.c.l.b16 %v1351
    %v1389 = vunpack.c.l.b16 %v1352
    %v1390 = vunpack.c.l.b16 %v1353
    %v1391 = vunpack.c.l.b16 %v1354
    %v1392 = vunpack.c.l.b16 %v1355
    %v1393 = vunpack.c.l.b16 %v1356
    %v1394 = vunpack.c.l.b16 %v1357
    %v1395 = vunpack.c.l.b16 %v1358
    %v1396 = vunpack.c.l.b16 %v1359
    %v1397 = vunpack.c.l.b16 %v1360
    %v1398 = vunpack.c.l.b16 %v1361
    %v1399 = vunpack.c.l.b16 %v1362
    %v1400 = vpack.c.b16 %v1385, %v1384
    %v1401 = vpack.c.b16 %v1387, %v1386
    %v1402 = vpack.c.b16 %v1389, %v1388
    %v1403 = vpack.c.b16 %v1391, %v1390
    %v1404 = vpack.c.b16 %v1393, %v1392
    %v1405 = vpack.c.b16 %v1395, %v1394
    %v1406 = vpack.c.b16 %v1397, %v1396
    %v1407 = vpack.c.b16 %v1399, %v1398
    %1416 = vmatprep.subr.bf16.mxu0 0
    %1417 = vmatpush1.bf16.msra.mxu0 %v1407
    %1418 = vmatprep.subr.bf16.mxu0 0
    %1419 = vmatpush1.bf16.msra.mxu0 %v1406
    %1420 = vmatprep.subr.bf16.mxu0 0
    %1421 = vmatpush1.bf16.msra.mxu0 %v1405
    %1422 = vmatprep.subr.bf16.mxu0 0
    %1423 = vmatpush1.bf16.msra.mxu0 %v1404
    %1424 = vmatprep.subr.bf16.mxu0 0
    %1425 = vmatpush1.bf16.msra.mxu0 %v1403
    %1426 = vmatprep.subr.bf16.mxu0 0
    %1427 = vmatpush1.bf16.msra.mxu0 %v1402
    %1428 = vmatprep.subr.bf16.mxu0 0
    %1429 = vmatpush1.bf16.msra.mxu0 %v1401
    %1430 = vmatprep.subr.bf16.mxu0 0
    %1431 = vmatpush1.bf16.msra.mxu0 %v1400
    %1432 = vmatprep.subr.bf16.mxu0 0
    %1433 = vmatpush2.bf16.msra.mxu0 0
    %1434 = vmatprep.subr.bf16.mxu0 0
    %1435 = vmatpush2.bf16.msra.mxu0 0
    %1436 = vmatprep.subr.bf16.mxu0 0
    %1437 = vmatpush2.bf16.msra.mxu0 0
    %1438 = vmatprep.subr.bf16.mxu0 0
    %1439 = vmatpush2.bf16.msra.mxu0 0
    %1440 = vmatprep.subr.bf16.mxu0 0
    %1441 = vmatpush2.bf16.msra.mxu0 0
    %1442 = vmatprep.subr.bf16.mxu0 0
    %1443 = vmatpush2.bf16.msra.mxu0 0
    %1444 = vmatprep.subr.bf16.mxu0 0
    %1445 = vmatpush2.bf16.msra.mxu0 0
    %1446 = vmatprep.subr.bf16.mxu0 0
    %1447 = vmatpush2.bf16.msra.mxu0 0
    %1448 = vmatprep.mubr.bf16.mxu0 0
    %1449 = vmatmul.mubr.bf16.gmra.mxu0 %v1335
    %v1450 = vpop.f32.mrf.mxu0
    %v1451 = vadd.f32 %v1367, %v1450
    %v1452 = vpop.f32.mrf.mxu0
    %v1453 = vpop.f32.mrf.mxu0
    %v1454 = vadd.f32 %v1367, %v1453
    %v1455 = vpop.f32.mrf.mxu0
    %1456 = vmatprep.mubr.bf16.mxu0 0
    %1457 = vmatmul.mubr.bf16.gmra.mxu0 %v1336
    %v1458 = vpop.f32.mrf.mxu0
    %v1459 = vadd.f32 %v1367, %v1458
    %v1460 = vpop.f32.mrf.mxu0
    %v1461 = vpop.f32.mrf.mxu0
    %v1462 = vadd.f32 %v1367, %v1461
    %v1463 = vpop.f32.mrf.mxu0
    %1464 = vmatprep.mubr.bf16.mxu0 0
    %1465 = vmatmul.mubr.bf16.gmra.mxu0 %v1337
    %v1466 = vpop.f32.mrf.mxu0
    %v1467 = vadd.f32 %v1367, %v1466
    %v1468 = vpop.f32.mrf.mxu0
    %v1469 = vpop.f32.mrf.mxu0
    %v1470 = vadd.f32 %v1367, %v1469
    %v1471 = vpop.f32.mrf.mxu0
    %1472 = vmatprep.mubr.bf16.mxu0 0
    %1473 = vmatmul.mubr.bf16.gmra.mxu0 %v1338
    %v1474 = vpop.f32.mrf.mxu0
    %v1475 = vadd.f32 %v1367, %v1474
    %v1476 = vpop.f32.mrf.mxu0
    %v1477 = vpop.f32.mrf.mxu0
    %v1478 = vadd.f32 %v1367, %v1477
    %v1479 = vpop.f32.mrf.mxu0
    %1480 = vmatprep.mubr.bf16.mxu0 0
    %1481 = vmatmul.mubr.bf16.gmra.mxu0 %v1339
    %v1482 = vpop.f32.mrf.mxu0
    %v1483 = vadd.f32 %v1367, %v1482
    %v1484 = vpop.f32.mrf.mxu0
    %v1485 = vpop.f32.mrf.mxu0
    %v1486 = vadd.f32 %v1367, %v1485
    %v1487 = vpop.f32.mrf.mxu0
    %1488 = vmatprep.mubr.bf16.mxu0 0
    %1489 = vmatmul.mubr.bf16.gmra.mxu0 %v1340
    %v1490 = vpop.f32.mrf.mxu0
    %v1491 = vadd.f32 %v1367, %v1490
    %v1492 = vpop.f32.mrf.mxu0
    %v1493 = vpop.f32.mrf.mxu0
    %v1494 = vadd.f32 %v1367, %v1493
    %v1495 = vpop.f32.mrf.mxu0
    %1496 = vmatprep.mubr.bf16.mxu0 0
    %1497 = vmatmul.mubr.bf16.gmra.mxu0 %v1341
    %v1498 = vpop.f32.mrf.mxu0
    %v1499 = vadd.f32 %v1367, %v1498
    %v1500 = vpop.f32.mrf.mxu0
    %v1501 = vpop.f32.mrf.mxu0
    %v1502 = vadd.f32 %v1367, %v1501
    %v1503 = vpop.f32.mrf.mxu0
    %1504 = vmatprep.mubr.bf16.mxu0 0
    %1505 = vmatmul.mubr.bf16.gmra.mxu0 %v1342
    %v1506 = vpop.f32.mrf.mxu0
    %v1507 = vadd.f32 %v1367, %v1506
    %v1508 = vpop.f32.mrf.mxu0
    %v1509 = vpop.f32.mrf.mxu0
    %v1510 = vadd.f32 %v1367, %v1509
    %v1511 = vpop.f32.mrf.mxu0
    %1512 = vmatprep.mubr.bf16.mxu0 0
    %1513 = vmatmul.mubr.bf16.gmra.mxu0 %v1343
    %v1514 = vpop.f32.mrf.mxu0
    %v1515 = vadd.f32 %v1367, %v1514
    %v1516 = vpop.f32.mrf.mxu0
    %v1517 = vpop.f32.mrf.mxu0
    %v1518 = vadd.f32 %v1367, %v1517
    %v1519 = vpop.f32.mrf.mxu0
    %1520 = vmatprep.mubr.bf16.mxu0 0
    %1521 = vmatmul.mubr.bf16.gmra.mxu0 %v1344
    %v1522 = vpop.f32.mrf.mxu0
    %v1523 = vadd.f32 %v1367, %v1522
    %v1524 = vpop.f32.mrf.mxu0
    %v1525 = vpop.f32.mrf.mxu0
    %v1526 = vadd.f32 %v1367, %v1525
    %v1527 = vpop.f32.mrf.mxu0
    %1528 = vmatprep.mubr.bf16.mxu0 0
    %1529 = vmatmul.mubr.bf16.gmra.mxu0 %v1345
    %v1530 = vpop.f32.mrf.mxu0
    %v1531 = vadd.f32 %v1367, %v1530
    %v1532 = vpop.f32.mrf.mxu0
    %v1533 = vpop.f32.mrf.mxu0
    %v1534 = vadd.f32 %v1367, %v1533
    %v1535 = vpop.f32.mrf.mxu0
    %1536 = vdwg.mxu0
    %v1537 = vmul.f32 %v1451, 0.01
    %v1538 = vmul.f32 %v1454, 0.01
    %v1539 = vmul.f32 %v1459, 0.01
    %v1540 = vmul.f32 %v1462, 0.01
    %v1541 = vmul.f32 %v1467, 0.01
    %v1542 = vmul.f32 %v1470, 0.01
    %v1543 = vmul.f32 %v1475, 0.01
    %v1544 = vmul.f32 %v1478, 0.01
    %v1545 = vmul.f32 %v1483, 0.01
    %v1546 = vmul.f32 %v1486, 0.01
    %v1547 = vmul.f32 %v1491, 0.01
    %v1548 = vmul.f32 %v1494, 0.01
    %v1549 = vmul.f32 %v1499, 0.01
    %v1550 = vmul.f32 %v1502, 0.01
    %v1551 = vmul.f32 %v1507, 0.01
    %v1552 = vmul.f32 %v1510, 0.01
    %v1553 = vmul.f32 %v1515, 0.01
    %v1554 = vmul.f32 %v1518, 0.01
    %v1555 = vmul.f32 %v1523, 0.01
    %v1556 = vmul.f32 %v1526, 0.01
    %v1557 = vmul.f32 %v1531, 0.01
    %v1558 = vmul.f32 %v1534, 0.01
    %v1559 = vmax.f32 %v1451, %v1537
    %v1560 = vmax.f32 %v1454, %v1538
    %v1561 = vmax.f32 %v1459, %v1539
    %v1562 = vmax.f32 %v1462, %v1540
    %v1563 = vmax.f32 %v1467, %v1541
    %v1564 = vmax.f32 %v1470, %v1542
    %v1565 = vmax.f32 %v1475, %v1543
    %v1566 = vmax.f32 %v1478, %v1544
    %v1567 = vmax.f32 %v1483, %v1545
    %v1568 = vmax.f32 %v1486, %v1546
    %v1569 = vmax.f32 %v1491, %v1547
    %v1570 = vmax.f32 %v1494, %v1548
    %v1571 = vmax.f32 %v1499, %v1549
    %v1572 = vmax.f32 %v1502, %v1550
    %v1573 = vmax.f32 %v1507, %v1551
    %v1574 = vmax.f32 %v1510, %v1552
    %v1575 = vmax.f32 %v1515, %v1553
    %v1576 = vmax.f32 %v1518, %v1554
    %v1577 = vmax.f32 %v1523, %v1555
    %v1578 = vmax.f32 %v1526, %v1556
    %v1579 = vmax.f32 %v1531, %v1557
    %v1580 = vmax.f32 %v1534, %v1558
    %v1581 = vpack.c.bf16 %v1560, %v1559
    %v1582 = vpack.c.bf16 %v1562, %v1561
    %v1583 = vpack.c.bf16 %v1564, %v1563
    %v1584 = vpack.c.bf16 %v1566, %v1565
    %v1585 = vpack.c.bf16 %v1568, %v1567
    %v1586 = vpack.c.bf16 %v1570, %v1569
    %v1587 = vpack.c.bf16 %v1572, %v1571
    %v1588 = vpack.c.bf16 %v1574, %v1573
    %v1589 = vpack.c.bf16 %v1576, %v1575
    %v1590 = vpack.c.bf16 %v1578, %v1577
    %v1591 = vpack.c.bf16 %v1580, %v1579
    %s1592 = scalar_lea.vmem [#allocation2], 384
    %v1593 = vld [vmem:[%s1592] sm:$0xf]
    %v1594 = vld [vmem:[%s1592 + $0x4] sm:$0xf]
    %v1595 = vld [vmem:[%s1592 + $0x8] sm:$0xf]
    %v1596 = vld [vmem:[%s1592 + $0xc] sm:$0xf]
    %v1597 = vld [vmem:[%s1592 + $0x10] sm:$0xf]
    %v1598 = vld [vmem:[%s1592 + $0x14] sm:$0xf]
    %v1599 = vld [vmem:[%s1592 + $0x18] sm:$0xf]
    %v1600 = vld [vmem:[%s1592 + $0x1c] sm:$0xf]
    %v1601 = vld [vmem:[%s1592 + $0x20] sm:$0xf]
    %v1602 = vld [vmem:[%s1592 + $0x24] sm:$0xf]
    %v1603 = vld [vmem:[%s1592 + $0x28] sm:$0xf]
    %v1604 = vld [vmem:[%s1592 + $0x2c] sm:$0xf]
    %v1605 = vld [vmem:[%s1592 + $0x30] sm:$0xf]
    %v1606 = vld [vmem:[%s1592 + $0x34] sm:$0xf]
    %v1607 = vld [vmem:[%s1592 + $0x38] sm:$0xf]
    %v1608 = vld [vmem:[%s1592 + $0x3c] sm:$0xf]
    %v1609 = vld [vmem:[%s2 + $0x6] sm:$0x1]
    %v1610 = vlaneseq
    %v1611 = vshrl.u32 %v1610, 7
    %v1612 = vsub.s32 0, %v1611
    %v1613 = vrot.slane %v1609, %v1612
    %v1630 = vunpack.c.l.b16 %v1593
    %v1631 = vunpack.c.l.b16 %v1594
    %v1632 = vunpack.c.l.b16 %v1595
    %v1633 = vunpack.c.l.b16 %v1596
    %v1634 = vunpack.c.l.b16 %v1597
    %v1635 = vunpack.c.l.b16 %v1598
    %v1636 = vunpack.c.l.b16 %v1599
    %v1637 = vunpack.c.l.b16 %v1600
    %v1638 = vunpack.c.l.b16 %v1601
    %v1639 = vunpack.c.l.b16 %v1602
    %v1640 = vunpack.c.l.b16 %v1603
    %v1641 = vunpack.c.l.b16 %v1604
    %v1642 = vunpack.c.l.b16 %v1605
    %v1643 = vunpack.c.l.b16 %v1606
    %v1644 = vunpack.c.l.b16 %v1607
    %v1645 = vunpack.c.l.b16 %v1608
    %v1646 = vpack.c.b16 %v1631, %v1630
    %v1647 = vpack.c.b16 %v1633, %v1632
    %v1648 = vpack.c.b16 %v1635, %v1634
    %v1649 = vpack.c.b16 %v1637, %v1636
    %v1650 = vpack.c.b16 %v1639, %v1638
    %v1651 = vpack.c.b16 %v1641, %v1640
    %v1652 = vpack.c.b16 %v1643, %v1642
    %v1653 = vpack.c.b16 %v1645, %v1644
    %1662 = vmatprep.subr.bf16.mxu0 0
    %1663 = vmatpush1.bf16.msra.mxu0 %v1653
    %1664 = vmatprep.subr.bf16.mxu0 0
    %1665 = vmatpush1.bf16.msra.mxu0 %v1652
    %1666 = vmatprep.subr.bf16.mxu0 0
    %1667 = vmatpush1.bf16.msra.mxu0 %v1651
    %1668 = vmatprep.subr.bf16.mxu0 0
    %1669 = vmatpush1.bf16.msra.mxu0 %v1650
    %1670 = vmatprep.subr.bf16.mxu0 0
    %1671 = vmatpush1.bf16.msra.mxu0 %v1649
    %1672 = vmatprep.subr.bf16.mxu0 0
    %1673 = vmatpush1.bf16.msra.mxu0 %v1648
    %1674 = vmatprep.subr.bf16.mxu0 0
    %1675 = vmatpush1.bf16.msra.mxu0 %v1647
    %1676 = vmatprep.subr.bf16.mxu0 0
    %1677 = vmatpush1.bf16.msra.mxu0 %v1646
    %1678 = vmatprep.subr.bf16.mxu0 0
    %1679 = vmatpush2.bf16.msra.mxu0 0
    %1680 = vmatprep.subr.bf16.mxu0 0
    %1681 = vmatpush2.bf16.msra.mxu0 0
    %1682 = vmatprep.subr.bf16.mxu0 0
    %1683 = vmatpush2.bf16.msra.mxu0 0
    %1684 = vmatprep.subr.bf16.mxu0 0
    %1685 = vmatpush2.bf16.msra.mxu0 0
    %1686 = vmatprep.subr.bf16.mxu0 0
    %1687 = vmatpush2.bf16.msra.mxu0 0
    %1688 = vmatprep.subr.bf16.mxu0 0
    %1689 = vmatpush2.bf16.msra.mxu0 0
    %1690 = vmatprep.subr.bf16.mxu0 0
    %1691 = vmatpush2.bf16.msra.mxu0 0
    %1692 = vmatprep.subr.bf16.mxu0 0
    %1693 = vmatpush2.bf16.msra.mxu0 0
    %1694 = vmatprep.mubr.bf16.mxu0 0
    %1695 = vmatmul.mubr.bf16.gmra.mxu0 %v1581
    %v1696 = vpop.f32.mrf.mxu0
    %v1697 = vadd.f32 %v1613, %v1696
    %v1698 = vpop.f32.mrf.mxu0
    %v1699 = vpop.f32.mrf.mxu0
    %v1700 = vadd.f32 %v1613, %v1699
    %v1701 = vpop.f32.mrf.mxu0
    %1702 = vmatprep.mubr.bf16.mxu0 0
    %1703 = vmatmul.mubr.bf16.gmra.mxu0 %v1582
    %v1704 = vpop.f32.mrf.mxu0
    %v1705 = vadd.f32 %v1613, %v1704
    %v1706 = vpop.f32.mrf.mxu0
    %v1707 = vpop.f32.mrf.mxu0
    %v1708 = vadd.f32 %v1613, %v1707
    %v1709 = vpop.f32.mrf.mxu0
    %1710 = vmatprep.mubr.bf16.mxu0 0
    %1711 = vmatmul.mubr.bf16.gmra.mxu0 %v1583
    %v1712 = vpop.f32.mrf.mxu0
    %v1713 = vadd.f32 %v1613, %v1712
    %v1714 = vpop.f32.mrf.mxu0
    %v1715 = vpop.f32.mrf.mxu0
    %v1716 = vadd.f32 %v1613, %v1715
    %v1717 = vpop.f32.mrf.mxu0
    %1718 = vmatprep.mubr.bf16.mxu0 0
    %1719 = vmatmul.mubr.bf16.gmra.mxu0 %v1584
    %v1720 = vpop.f32.mrf.mxu0
    %v1721 = vadd.f32 %v1613, %v1720
    %v1722 = vpop.f32.mrf.mxu0
    %v1723 = vpop.f32.mrf.mxu0
    %v1724 = vadd.f32 %v1613, %v1723
    %v1725 = vpop.f32.mrf.mxu0
    %1726 = vmatprep.mubr.bf16.mxu0 0
    %1727 = vmatmul.mubr.bf16.gmra.mxu0 %v1585
    %v1728 = vpop.f32.mrf.mxu0
    %v1729 = vadd.f32 %v1613, %v1728
    %v1730 = vpop.f32.mrf.mxu0
    %v1731 = vpop.f32.mrf.mxu0
    %v1732 = vadd.f32 %v1613, %v1731
    %v1733 = vpop.f32.mrf.mxu0
    %1734 = vmatprep.mubr.bf16.mxu0 0
    %1735 = vmatmul.mubr.bf16.gmra.mxu0 %v1586
    %v1736 = vpop.f32.mrf.mxu0
    %v1737 = vadd.f32 %v1613, %v1736
    %v1738 = vpop.f32.mrf.mxu0
    %v1739 = vpop.f32.mrf.mxu0
    %v1740 = vadd.f32 %v1613, %v1739
    %v1741 = vpop.f32.mrf.mxu0
    %1742 = vmatprep.mubr.bf16.mxu0 0
    %1743 = vmatmul.mubr.bf16.gmra.mxu0 %v1587
    %v1744 = vpop.f32.mrf.mxu0
    %v1745 = vadd.f32 %v1613, %v1744
    %v1746 = vpop.f32.mrf.mxu0
    %v1747 = vpop.f32.mrf.mxu0
    %v1748 = vadd.f32 %v1613, %v1747
    %v1749 = vpop.f32.mrf.mxu0
    %1750 = vmatprep.mubr.bf16.mxu0 0
    %1751 = vmatmul.mubr.bf16.gmra.mxu0 %v1588
    %v1752 = vpop.f32.mrf.mxu0
    %v1753 = vadd.f32 %v1613, %v1752
    %v1754 = vpop.f32.mrf.mxu0
    %v1755 = vpop.f32.mrf.mxu0
    %v1756 = vadd.f32 %v1613, %v1755
    %v1757 = vpop.f32.mrf.mxu0
    %1758 = vmatprep.mubr.bf16.mxu0 0
    %1759 = vmatmul.mubr.bf16.gmra.mxu0 %v1589
    %v1760 = vpop.f32.mrf.mxu0
    %v1761 = vadd.f32 %v1613, %v1760
    %v1762 = vpop.f32.mrf.mxu0
    %v1763 = vpop.f32.mrf.mxu0
    %v1764 = vadd.f32 %v1613, %v1763
    %v1765 = vpop.f32.mrf.mxu0
    %1766 = vmatprep.mubr.bf16.mxu0 0
    %1767 = vmatmul.mubr.bf16.gmra.mxu0 %v1590
    %v1768 = vpop.f32.mrf.mxu0
    %v1769 = vadd.f32 %v1613, %v1768
    %v1770 = vpop.f32.mrf.mxu0
    %v1771 = vpop.f32.mrf.mxu0
    %v1772 = vadd.f32 %v1613, %v1771
    %v1773 = vpop.f32.mrf.mxu0
    %1774 = vmatprep.mubr.bf16.mxu0 0
    %1775 = vmatmul.mubr.bf16.gmra.mxu0 %v1591
    %v1776 = vpop.f32.mrf.mxu0
    %v1777 = vadd.f32 %v1613, %v1776
    %v1778 = vpop.f32.mrf.mxu0
    %v1779 = vpop.f32.mrf.mxu0
    %v1780 = vadd.f32 %v1613, %v1779
    %v1781 = vpop.f32.mrf.mxu0
    %1782 = vdwg.mxu0
    %v1783 = vmul.f32 %v1697, 0.01
    %v1784 = vmul.f32 %v1700, 0.01
    %v1785 = vmul.f32 %v1705, 0.01
    %v1786 = vmul.f32 %v1708, 0.01
    %v1787 = vmul.f32 %v1713, 0.01
    %v1788 = vmul.f32 %v1716, 0.01
    %v1789 = vmul.f32 %v1721, 0.01
    %v1790 = vmul.f32 %v1724, 0.01
    %v1791 = vmul.f32 %v1729, 0.01
    %v1792 = vmul.f32 %v1732, 0.01
    %v1793 = vmul.f32 %v1737, 0.01
    %v1794 = vmul.f32 %v1740, 0.01
    %v1795 = vmul.f32 %v1745, 0.01
    %v1796 = vmul.f32 %v1748, 0.01
    %v1797 = vmul.f32 %v1753, 0.01
    %v1798 = vmul.f32 %v1756, 0.01
    %v1799 = vmul.f32 %v1761, 0.01
    %v1800 = vmul.f32 %v1764, 0.01
    %v1801 = vmul.f32 %v1769, 0.01
    %v1802 = vmul.f32 %v1772, 0.01
    %v1803 = vmul.f32 %v1777, 0.01
    %v1804 = vmul.f32 %v1780, 0.01
    %v1805 = vmax.f32 %v1697, %v1783
    %v1806 = vmax.f32 %v1700, %v1784
    %v1807 = vmax.f32 %v1705, %v1785
    %v1808 = vmax.f32 %v1708, %v1786
    %v1809 = vmax.f32 %v1713, %v1787
    %v1810 = vmax.f32 %v1716, %v1788
    %v1811 = vmax.f32 %v1721, %v1789
    %v1812 = vmax.f32 %v1724, %v1790
    %v1813 = vmax.f32 %v1729, %v1791
    %v1814 = vmax.f32 %v1732, %v1792
    %v1815 = vmax.f32 %v1737, %v1793
    %v1816 = vmax.f32 %v1740, %v1794
    %v1817 = vmax.f32 %v1745, %v1795
    %v1818 = vmax.f32 %v1748, %v1796
    %v1819 = vmax.f32 %v1753, %v1797
    %v1820 = vmax.f32 %v1756, %v1798
    %v1821 = vmax.f32 %v1761, %v1799
    %v1822 = vmax.f32 %v1764, %v1800
    %v1823 = vmax.f32 %v1769, %v1801
    %v1824 = vmax.f32 %v1772, %v1802
    %v1825 = vmax.f32 %v1777, %v1803
    %v1826 = vmax.f32 %v1780, %v1804
    %v1827 = vpack.c.bf16 %v1806, %v1805
    %v1828 = vpack.c.bf16 %v1808, %v1807
    %v1829 = vpack.c.bf16 %v1810, %v1809
    %v1830 = vpack.c.bf16 %v1812, %v1811
    %v1831 = vpack.c.bf16 %v1814, %v1813
    %v1832 = vpack.c.bf16 %v1816, %v1815
    %v1833 = vpack.c.bf16 %v1818, %v1817
    %v1834 = vpack.c.bf16 %v1820, %v1819
    %v1835 = vpack.c.bf16 %v1822, %v1821
    %v1836 = vpack.c.bf16 %v1824, %v1823
    %v1837 = vpack.c.bf16 %v1826, %v1825
    %s1838 = scalar_lea.vmem [#allocation2], 448
    %v1839 = vld [vmem:[%s1838] sm:$0xf]
    %v1840 = vld [vmem:[%s1838 + $0x4] sm:$0xf]
    %v1841 = vld [vmem:[%s1838 + $0x8] sm:$0xf]
    %v1842 = vld [vmem:[%s1838 + $0xc] sm:$0xf]
    %v1843 = vld [vmem:[%s1838 + $0x10] sm:$0xf]
    %v1844 = vld [vmem:[%s1838 + $0x14] sm:$0xf]
    %v1845 = vld [vmem:[%s1838 + $0x18] sm:$0xf]
    %v1846 = vld [vmem:[%s1838 + $0x1c] sm:$0xf]
    %v1847 = vld [vmem:[%s1838 + $0x20] sm:$0xf]
    %v1848 = vld [vmem:[%s1838 + $0x24] sm:$0xf]
    %v1849 = vld [vmem:[%s1838 + $0x28] sm:$0xf]
    %v1850 = vld [vmem:[%s1838 + $0x2c] sm:$0xf]
    %v1851 = vld [vmem:[%s1838 + $0x30] sm:$0xf]
    %v1852 = vld [vmem:[%s1838 + $0x34] sm:$0xf]
    %v1853 = vld [vmem:[%s1838 + $0x38] sm:$0xf]
    %v1854 = vld [vmem:[%s1838 + $0x3c] sm:$0xf]
    %v1855 = vld [vmem:[%s2 + $0x7] sm:$0x1]
    %v1856 = vlaneseq
    %v1857 = vshrl.u32 %v1856, 7
    %v1858 = vsub.s32 0, %v1857
    %v1859 = vrot.slane %v1855, %v1858
    %v1876 = vunpack.c.l.b16 %v1839
    %v1877 = vunpack.c.l.b16 %v1840
    %v1878 = vunpack.c.l.b16 %v1841
    %v1879 = vunpack.c.l.b16 %v1842
    %v1880 = vunpack.c.l.b16 %v1843
    %v1881 = vunpack.c.l.b16 %v1844
    %v1882 = vunpack.c.l.b16 %v1845
    %v1883 = vunpack.c.l.b16 %v1846
    %v1884 = vunpack.c.l.b16 %v1847
    %v1885 = vunpack.c.l.b16 %v1848
    %v1886 = vunpack.c.l.b16 %v1849
    %v1887 = vunpack.c.l.b16 %v1850
    %v1888 = vunpack.c.l.b16 %v1851
    %v1889 = vunpack.c.l.b16 %v1852
    %v1890 = vunpack.c.l.b16 %v1853
    %v1891 = vunpack.c.l.b16 %v1854
    %v1892 = vpack.c.b16 %v1877, %v1876
    %v1893 = vpack.c.b16 %v1879, %v1878
    %v1894 = vpack.c.b16 %v1881, %v1880
    %v1895 = vpack.c.b16 %v1883, %v1882
    %v1896 = vpack.c.b16 %v1885, %v1884
    %v1897 = vpack.c.b16 %v1887, %v1886
    %v1898 = vpack.c.b16 %v1889, %v1888
    %v1899 = vpack.c.b16 %v1891, %v1890
    %1908 = vmatprep.subr.bf16.mxu0 0
    %1909 = vmatpush1.bf16.msra.mxu0 %v1899
    %1910 = vmatprep.subr.bf16.mxu0 0
    %1911 = vmatpush1.bf16.msra.mxu0 %v1898
    %1912 = vmatprep.subr.bf16.mxu0 0
    %1913 = vmatpush1.bf16.msra.mxu0 %v1897
    %1914 = vmatprep.subr.bf16.mxu0 0
    %1915 = vmatpush1.bf16.msra.mxu0 %v1896
    %1916 = vmatprep.subr.bf16.mxu0 0
    %1917 = vmatpush1.bf16.msra.mxu0 %v1895
    %1918 = vmatprep.subr.bf16.mxu0 0
    %1919 = vmatpush1.bf16.msra.mxu0 %v1894
    %1920 = vmatprep.subr.bf16.mxu0 0
    %1921 = vmatpush1.bf16.msra.mxu0 %v1893
    %1922 = vmatprep.subr.bf16.mxu0 0
    %1923 = vmatpush1.bf16.msra.mxu0 %v1892
    %1924 = vmatprep.subr.bf16.mxu0 0
    %1925 = vmatpush2.bf16.msra.mxu0 0
    %1926 = vmatprep.subr.bf16.mxu0 0
    %1927 = vmatpush2.bf16.msra.mxu0 0
    %1928 = vmatprep.subr.bf16.mxu0 0
    %1929 = vmatpush2.bf16.msra.mxu0 0
    %1930 = vmatprep.subr.bf16.mxu0 0
    %1931 = vmatpush2.bf16.msra.mxu0 0
    %1932 = vmatprep.subr.bf16.mxu0 0
    %1933 = vmatpush2.bf16.msra.mxu0 0
    %1934 = vmatprep.subr.bf16.mxu0 0
    %1935 = vmatpush2.bf16.msra.mxu0 0
    %1936 = vmatprep.subr.bf16.mxu0 0
    %1937 = vmatpush2.bf16.msra.mxu0 0
    %1938 = vmatprep.subr.bf16.mxu0 0
    %1939 = vmatpush2.bf16.msra.mxu0 0
    %1940 = vmatprep.mubr.bf16.mxu0 0
    %1941 = vmatmul.mubr.bf16.gmra.mxu0 %v1827
    %v1942 = vpop.f32.mrf.mxu0
    %v1943 = vadd.f32 %v1859, %v1942
    %v1944 = vpop.f32.mrf.mxu0
    %v1945 = vpop.f32.mrf.mxu0
    %v1946 = vadd.f32 %v1859, %v1945
    %v1947 = vpop.f32.mrf.mxu0
    %1948 = vmatprep.mubr.bf16.mxu0 0
    %1949 = vmatmul.mubr.bf16.gmra.mxu0 %v1828
    %v1950 = vpop.f32.mrf.mxu0
    %v1951 = vadd.f32 %v1859, %v1950
    %v1952 = vpop.f32.mrf.mxu0
    %v1953 = vpop.f32.mrf.mxu0
    %v1954 = vadd.f32 %v1859, %v1953
    %v1955 = vpop.f32.mrf.mxu0
    %1956 = vmatprep.mubr.bf16.mxu0 0
    %1957 = vmatmul.mubr.bf16.gmra.mxu0 %v1829
    %v1958 = vpop.f32.mrf.mxu0
    %v1959 = vadd.f32 %v1859, %v1958
    %v1960 = vpop.f32.mrf.mxu0
    %v1961 = vpop.f32.mrf.mxu0
    %v1962 = vadd.f32 %v1859, %v1961
    %v1963 = vpop.f32.mrf.mxu0
    %1964 = vmatprep.mubr.bf16.mxu0 0
    %1965 = vmatmul.mubr.bf16.gmra.mxu0 %v1830
    %v1966 = vpop.f32.mrf.mxu0
    %v1967 = vadd.f32 %v1859, %v1966
    %v1968 = vpop.f32.mrf.mxu0
    %v1969 = vpop.f32.mrf.mxu0
    %v1970 = vadd.f32 %v1859, %v1969
    %v1971 = vpop.f32.mrf.mxu0
    %1972 = vmatprep.mubr.bf16.mxu0 0
    %1973 = vmatmul.mubr.bf16.gmra.mxu0 %v1831
    %v1974 = vpop.f32.mrf.mxu0
    %v1975 = vadd.f32 %v1859, %v1974
    %v1976 = vpop.f32.mrf.mxu0
    %v1977 = vpop.f32.mrf.mxu0
    %v1978 = vadd.f32 %v1859, %v1977
    %v1979 = vpop.f32.mrf.mxu0
    %1980 = vmatprep.mubr.bf16.mxu0 0
    %1981 = vmatmul.mubr.bf16.gmra.mxu0 %v1832
    %v1982 = vpop.f32.mrf.mxu0
    %v1983 = vadd.f32 %v1859, %v1982
    %v1984 = vpop.f32.mrf.mxu0
    %v1985 = vpop.f32.mrf.mxu0
    %v1986 = vadd.f32 %v1859, %v1985
    %v1987 = vpop.f32.mrf.mxu0
    %1988 = vmatprep.mubr.bf16.mxu0 0
    %1989 = vmatmul.mubr.bf16.gmra.mxu0 %v1833
    %v1990 = vpop.f32.mrf.mxu0
    %v1991 = vadd.f32 %v1859, %v1990
    %v1992 = vpop.f32.mrf.mxu0
    %v1993 = vpop.f32.mrf.mxu0
    %v1994 = vadd.f32 %v1859, %v1993
    %v1995 = vpop.f32.mrf.mxu0
    %1996 = vmatprep.mubr.bf16.mxu0 0
    %1997 = vmatmul.mubr.bf16.gmra.mxu0 %v1834
    %v1998 = vpop.f32.mrf.mxu0
    %v1999 = vadd.f32 %v1859, %v1998
    %v2000 = vpop.f32.mrf.mxu0
    %v2001 = vpop.f32.mrf.mxu0
    %v2002 = vadd.f32 %v1859, %v2001
    %v2003 = vpop.f32.mrf.mxu0
    %2004 = vmatprep.mubr.bf16.mxu0 0
    %2005 = vmatmul.mubr.bf16.gmra.mxu0 %v1835
    %v2006 = vpop.f32.mrf.mxu0
    %v2007 = vadd.f32 %v1859, %v2006
    %v2008 = vpop.f32.mrf.mxu0
    %v2009 = vpop.f32.mrf.mxu0
    %v2010 = vadd.f32 %v1859, %v2009
    %v2011 = vpop.f32.mrf.mxu0
    %2012 = vmatprep.mubr.bf16.mxu0 0
    %2013 = vmatmul.mubr.bf16.gmra.mxu0 %v1836
    %v2014 = vpop.f32.mrf.mxu0
    %v2015 = vadd.f32 %v1859, %v2014
    %v2016 = vpop.f32.mrf.mxu0
    %v2017 = vpop.f32.mrf.mxu0
    %v2018 = vadd.f32 %v1859, %v2017
    %v2019 = vpop.f32.mrf.mxu0
    %2020 = vmatprep.mubr.bf16.mxu0 0
    %2021 = vmatmul.mubr.bf16.gmra.mxu0 %v1837
    %v2022 = vpop.f32.mrf.mxu0
    %v2023 = vadd.f32 %v1859, %v2022
    %v2024 = vpop.f32.mrf.mxu0
    %v2025 = vpop.f32.mrf.mxu0
    %v2026 = vadd.f32 %v1859, %v2025
    %v2027 = vpop.f32.mrf.mxu0
    %2028 = vdwg.mxu0
    %v2029 = vmul.f32 %v1943, 0.01
    %v2030 = vmul.f32 %v1946, 0.01
    %v2031 = vmul.f32 %v1951, 0.01
    %v2032 = vmul.f32 %v1954, 0.01
    %v2033 = vmul.f32 %v1959, 0.01
    %v2034 = vmul.f32 %v1962, 0.01
    %v2035 = vmul.f32 %v1967, 0.01
    %v2036 = vmul.f32 %v1970, 0.01
    %v2037 = vmul.f32 %v1975, 0.01
    %v2038 = vmul.f32 %v1978, 0.01
    %v2039 = vmul.f32 %v1983, 0.01
    %v2040 = vmul.f32 %v1986, 0.01
    %v2041 = vmul.f32 %v1991, 0.01
    %v2042 = vmul.f32 %v1994, 0.01
    %v2043 = vmul.f32 %v1999, 0.01
    %v2044 = vmul.f32 %v2002, 0.01
    %v2045 = vmul.f32 %v2007, 0.01
    %v2046 = vmul.f32 %v2010, 0.01
    %v2047 = vmul.f32 %v2015, 0.01
    %v2048 = vmul.f32 %v2018, 0.01
    %v2049 = vmul.f32 %v2023, 0.01
    %v2050 = vmul.f32 %v2026, 0.01
    %v2051 = vmax.f32 %v1943, %v2029
    %v2052 = vmax.f32 %v1946, %v2030
    %v2053 = vmax.f32 %v1951, %v2031
    %v2054 = vmax.f32 %v1954, %v2032
    %v2055 = vmax.f32 %v1959, %v2033
    %v2056 = vmax.f32 %v1962, %v2034
    %v2057 = vmax.f32 %v1967, %v2035
    %v2058 = vmax.f32 %v1970, %v2036
    %v2059 = vmax.f32 %v1975, %v2037
    %v2060 = vmax.f32 %v1978, %v2038
    %v2061 = vmax.f32 %v1983, %v2039
    %v2062 = vmax.f32 %v1986, %v2040
    %v2063 = vmax.f32 %v1991, %v2041
    %v2064 = vmax.f32 %v1994, %v2042
    %v2065 = vmax.f32 %v1999, %v2043
    %v2066 = vmax.f32 %v2002, %v2044
    %v2067 = vmax.f32 %v2007, %v2045
    %v2068 = vmax.f32 %v2010, %v2046
    %v2069 = vmax.f32 %v2015, %v2047
    %v2070 = vmax.f32 %v2018, %v2048
    %v2071 = vmax.f32 %v2023, %v2049
    %v2072 = vmax.f32 %v2026, %v2050
    %v2073 = vpack.c.bf16 %v2052, %v2051
    %v2074 = vpack.c.bf16 %v2054, %v2053
    %v2075 = vpack.c.bf16 %v2056, %v2055
    %v2076 = vpack.c.bf16 %v2058, %v2057
    %v2077 = vpack.c.bf16 %v2060, %v2059
    %v2078 = vpack.c.bf16 %v2062, %v2061
    %v2079 = vpack.c.bf16 %v2064, %v2063
    %v2080 = vpack.c.bf16 %v2066, %v2065
    %v2081 = vpack.c.bf16 %v2068, %v2067
    %v2082 = vpack.c.bf16 %v2070, %v2069
    %v2083 = vpack.c.bf16 %v2072, %v2071
    %s2084 = scalar_lea.vmem [#allocation2], 512
    %v2085 = vld [vmem:[%s2084] sm:$0xf]
    %v2086 = vld [vmem:[%s2084 + $0x4] sm:$0xf]
    %v2087 = vld [vmem:[%s2084 + $0x8] sm:$0xf]
    %v2088 = vld [vmem:[%s2084 + $0xc] sm:$0xf]
    %v2089 = vld [vmem:[%s2084 + $0x10] sm:$0xf]
    %v2090 = vld [vmem:[%s2084 + $0x14] sm:$0xf]
    %v2091 = vld [vmem:[%s2084 + $0x18] sm:$0xf]
    %v2092 = vld [vmem:[%s2084 + $0x1c] sm:$0xf]
    %v2093 = vld [vmem:[%s2084 + $0x20] sm:$0xf]
    %v2094 = vld [vmem:[%s2084 + $0x24] sm:$0xf]
    %v2095 = vld [vmem:[%s2084 + $0x28] sm:$0xf]
    %v2096 = vld [vmem:[%s2084 + $0x2c] sm:$0xf]
    %v2097 = vld [vmem:[%s2084 + $0x30] sm:$0xf]
    %v2098 = vld [vmem:[%s2084 + $0x34] sm:$0xf]
    %v2099 = vld [vmem:[%s2084 + $0x38] sm:$0xf]
    %v2100 = vld [vmem:[%s2084 + $0x3c] sm:$0xf]
    %v2101 = vld [vmem:[%s2 + $0x8] sm:$0x1]
    %v2102 = vlaneseq
    %v2103 = vshrl.u32 %v2102, 7
    %v2104 = vsub.s32 0, %v2103
    %v2105 = vrot.slane %v2101, %v2104
    %v2122 = vunpack.c.l.b16 %v2085
    %v2123 = vunpack.c.l.b16 %v2086
    %v2124 = vunpack.c.l.b16 %v2087
    %v2125 = vunpack.c.l.b16 %v2088
    %v2126 = vunpack.c.l.b16 %v2089
    %v2127 = vunpack.c.l.b16 %v2090
    %v2128 = vunpack.c.l.b16 %v2091
    %v2129 = vunpack.c.l.b16 %v2092
    %v2130 = vunpack.c.l.b16 %v2093
    %v2131 = vunpack.c.l.b16 %v2094
    %v2132 = vunpack.c.l.b16 %v2095
    %v2133 = vunpack.c.l.b16 %v2096
    %v2134 = vunpack.c.l.b16 %v2097
    %v2135 = vunpack.c.l.b16 %v2098
    %v2136 = vunpack.c.l.b16 %v2099
    %v2137 = vunpack.c.l.b16 %v2100
    %v2138 = vpack.c.b16 %v2123, %v2122
    %v2139 = vpack.c.b16 %v2125, %v2124
    %v2140 = vpack.c.b16 %v2127, %v2126
    %v2141 = vpack.c.b16 %v2129, %v2128
    %v2142 = vpack.c.b16 %v2131, %v2130
    %v2143 = vpack.c.b16 %v2133, %v2132
    %v2144 = vpack.c.b16 %v2135, %v2134
    %v2145 = vpack.c.b16 %v2137, %v2136
    %2154 = vmatprep.subr.bf16.mxu0 0
    %2155 = vmatpush1.bf16.msra.mxu0 %v2145
    %2156 = vmatprep.subr.bf16.mxu0 0
    %2157 = vmatpush1.bf16.msra.mxu0 %v2144
    %2158 = vmatprep.subr.bf16.mxu0 0
    %2159 = vmatpush1.bf16.msra.mxu0 %v2143
    %2160 = vmatprep.subr.bf16.mxu0 0
    %2161 = vmatpush1.bf16.msra.mxu0 %v2142
    %2162 = vmatprep.subr.bf16.mxu0 0
    %2163 = vmatpush1.bf16.msra.mxu0 %v2141
    %2164 = vmatprep.subr.bf16.mxu0 0
    %2165 = vmatpush1.bf16.msra.mxu0 %v2140
    %2166 = vmatprep.subr.bf16.mxu0 0
    %2167 = vmatpush1.bf16.msra.mxu0 %v2139
    %2168 = vmatprep.subr.bf16.mxu0 0
    %2169 = vmatpush1.bf16.msra.mxu0 %v2138
    %2170 = vmatprep.subr.bf16.mxu0 0
    %2171 = vmatpush2.bf16.msra.mxu0 0
    %2172 = vmatprep.subr.bf16.mxu0 0
    %2173 = vmatpush2.bf16.msra.mxu0 0
    %2174 = vmatprep.subr.bf16.mxu0 0
    %2175 = vmatpush2.bf16.msra.mxu0 0
    %2176 = vmatprep.subr.bf16.mxu0 0
    %2177 = vmatpush2.bf16.msra.mxu0 0
    %2178 = vmatprep.subr.bf16.mxu0 0
    %2179 = vmatpush2.bf16.msra.mxu0 0
    %2180 = vmatprep.subr.bf16.mxu0 0
    %2181 = vmatpush2.bf16.msra.mxu0 0
    %2182 = vmatprep.subr.bf16.mxu0 0
    %2183 = vmatpush2.bf16.msra.mxu0 0
    %2184 = vmatprep.subr.bf16.mxu0 0
    %2185 = vmatpush2.bf16.msra.mxu0 0
    %2186 = vmatprep.mubr.bf16.mxu0 0
    %2187 = vmatmul.mubr.bf16.gmra.mxu0 %v2073
    %v2188 = vpop.f32.mrf.mxu0
    %v2189 = vadd.f32 %v2105, %v2188
    %v2190 = vpop.f32.mrf.mxu0
    %v2191 = vpop.f32.mrf.mxu0
    %v2192 = vadd.f32 %v2105, %v2191
    %v2193 = vpop.f32.mrf.mxu0
    %2194 = vmatprep.mubr.bf16.mxu0 0
    %2195 = vmatmul.mubr.bf16.gmra.mxu0 %v2074
    %v2196 = vpop.f32.mrf.mxu0
    %v2197 = vadd.f32 %v2105, %v2196
    %v2198 = vpop.f32.mrf.mxu0
    %v2199 = vpop.f32.mrf.mxu0
    %v2200 = vadd.f32 %v2105, %v2199
    %v2201 = vpop.f32.mrf.mxu0
    %2202 = vmatprep.mubr.bf16.mxu0 0
    %2203 = vmatmul.mubr.bf16.gmra.mxu0 %v2075
    %v2204 = vpop.f32.mrf.mxu0
    %v2205 = vadd.f32 %v2105, %v2204
    %v2206 = vpop.f32.mrf.mxu0
    %v2207 = vpop.f32.mrf.mxu0
    %v2208 = vadd.f32 %v2105, %v2207
    %v2209 = vpop.f32.mrf.mxu0
    %2210 = vmatprep.mubr.bf16.mxu0 0
    %2211 = vmatmul.mubr.bf16.gmra.mxu0 %v2076
    %v2212 = vpop.f32.mrf.mxu0
    %v2213 = vadd.f32 %v2105, %v2212
    %v2214 = vpop.f32.mrf.mxu0
    %v2215 = vpop.f32.mrf.mxu0
    %v2216 = vadd.f32 %v2105, %v2215
    %v2217 = vpop.f32.mrf.mxu0
    %2218 = vmatprep.mubr.bf16.mxu0 0
    %2219 = vmatmul.mubr.bf16.gmra.mxu0 %v2077
    %v2220 = vpop.f32.mrf.mxu0
    %v2221 = vadd.f32 %v2105, %v2220
    %v2222 = vpop.f32.mrf.mxu0
    %v2223 = vpop.f32.mrf.mxu0
    %v2224 = vadd.f32 %v2105, %v2223
    %v2225 = vpop.f32.mrf.mxu0
    %2226 = vmatprep.mubr.bf16.mxu0 0
    %2227 = vmatmul.mubr.bf16.gmra.mxu0 %v2078
    %v2228 = vpop.f32.mrf.mxu0
    %v2229 = vadd.f32 %v2105, %v2228
    %v2230 = vpop.f32.mrf.mxu0
    %v2231 = vpop.f32.mrf.mxu0
    %v2232 = vadd.f32 %v2105, %v2231
    %v2233 = vpop.f32.mrf.mxu0
    %2234 = vmatprep.mubr.bf16.mxu0 0
    %2235 = vmatmul.mubr.bf16.gmra.mxu0 %v2079
    %v2236 = vpop.f32.mrf.mxu0
    %v2237 = vadd.f32 %v2105, %v2236
    %v2238 = vpop.f32.mrf.mxu0
    %v2239 = vpop.f32.mrf.mxu0
    %v2240 = vadd.f32 %v2105, %v2239
    %v2241 = vpop.f32.mrf.mxu0
    %2242 = vmatprep.mubr.bf16.mxu0 0
    %2243 = vmatmul.mubr.bf16.gmra.mxu0 %v2080
    %v2244 = vpop.f32.mrf.mxu0
    %v2245 = vadd.f32 %v2105, %v2244
    %v2246 = vpop.f32.mrf.mxu0
    %v2247 = vpop.f32.mrf.mxu0
    %v2248 = vadd.f32 %v2105, %v2247
    %v2249 = vpop.f32.mrf.mxu0
    %2250 = vmatprep.mubr.bf16.mxu0 0
    %2251 = vmatmul.mubr.bf16.gmra.mxu0 %v2081
    %v2252 = vpop.f32.mrf.mxu0
    %v2253 = vadd.f32 %v2105, %v2252
    %v2254 = vpop.f32.mrf.mxu0
    %v2255 = vpop.f32.mrf.mxu0
    %v2256 = vadd.f32 %v2105, %v2255
    %v2257 = vpop.f32.mrf.mxu0
    %2258 = vmatprep.mubr.bf16.mxu0 0
    %2259 = vmatmul.mubr.bf16.gmra.mxu0 %v2082
    %v2260 = vpop.f32.mrf.mxu0
    %v2261 = vadd.f32 %v2105, %v2260
    %v2262 = vpop.f32.mrf.mxu0
    %v2263 = vpop.f32.mrf.mxu0
    %v2264 = vadd.f32 %v2105, %v2263
    %v2265 = vpop.f32.mrf.mxu0
    %2266 = vmatprep.mubr.bf16.mxu0 0
    %2267 = vmatmul.mubr.bf16.gmra.mxu0 %v2083
    %v2268 = vpop.f32.mrf.mxu0
    %v2269 = vadd.f32 %v2105, %v2268
    %v2270 = vpop.f32.mrf.mxu0
    %v2271 = vpop.f32.mrf.mxu0
    %v2272 = vadd.f32 %v2105, %v2271
    %v2273 = vpop.f32.mrf.mxu0
    %2274 = vdwg.mxu0
    %v2275 = vmul.f32 %v2189, 0.01
    %v2276 = vmul.f32 %v2192, 0.01
    %v2277 = vmul.f32 %v2197, 0.01
    %v2278 = vmul.f32 %v2200, 0.01
    %v2279 = vmul.f32 %v2205, 0.01
    %v2280 = vmul.f32 %v2208, 0.01
    %v2281 = vmul.f32 %v2213, 0.01
    %v2282 = vmul.f32 %v2216, 0.01
    %v2283 = vmul.f32 %v2221, 0.01
    %v2284 = vmul.f32 %v2224, 0.01
    %v2285 = vmul.f32 %v2229, 0.01
    %v2286 = vmul.f32 %v2232, 0.01
    %v2287 = vmul.f32 %v2237, 0.01
    %v2288 = vmul.f32 %v2240, 0.01
    %v2289 = vmul.f32 %v2245, 0.01
    %v2290 = vmul.f32 %v2248, 0.01
    %v2291 = vmul.f32 %v2253, 0.01
    %v2292 = vmul.f32 %v2256, 0.01
    %v2293 = vmul.f32 %v2261, 0.01
    %v2294 = vmul.f32 %v2264, 0.01
    %v2295 = vmul.f32 %v2269, 0.01
    %v2296 = vmul.f32 %v2272, 0.01
    %v2297 = vmax.f32 %v2189, %v2275
    %v2298 = vmax.f32 %v2192, %v2276
    %v2299 = vmax.f32 %v2197, %v2277
    %v2300 = vmax.f32 %v2200, %v2278
    %v2301 = vmax.f32 %v2205, %v2279
    %v2302 = vmax.f32 %v2208, %v2280
    %v2303 = vmax.f32 %v2213, %v2281
    %v2304 = vmax.f32 %v2216, %v2282
    %v2305 = vmax.f32 %v2221, %v2283
    %v2306 = vmax.f32 %v2224, %v2284
    %v2307 = vmax.f32 %v2229, %v2285
    %v2308 = vmax.f32 %v2232, %v2286
    %v2309 = vmax.f32 %v2237, %v2287
    %v2310 = vmax.f32 %v2240, %v2288
    %v2311 = vmax.f32 %v2245, %v2289
    %v2312 = vmax.f32 %v2248, %v2290
    %v2313 = vmax.f32 %v2253, %v2291
    %v2314 = vmax.f32 %v2256, %v2292
    %v2315 = vmax.f32 %v2261, %v2293
    %v2316 = vmax.f32 %v2264, %v2294
    %v2317 = vmax.f32 %v2269, %v2295
    %v2318 = vmax.f32 %v2272, %v2296
    %v2319 = vpack.c.bf16 %v2298, %v2297
    %v2320 = vpack.c.bf16 %v2300, %v2299
    %v2321 = vpack.c.bf16 %v2302, %v2301
    %v2322 = vpack.c.bf16 %v2304, %v2303
    %v2323 = vpack.c.bf16 %v2306, %v2305
    %v2324 = vpack.c.bf16 %v2308, %v2307
    %v2325 = vpack.c.bf16 %v2310, %v2309
    %v2326 = vpack.c.bf16 %v2312, %v2311
    %v2327 = vpack.c.bf16 %v2314, %v2313
    %v2328 = vpack.c.bf16 %v2316, %v2315
    %v2329 = vpack.c.bf16 %v2318, %v2317
    %s2330 = scalar_lea.vmem [#allocation2], 576
    %v2331 = vld [vmem:[%s2330] sm:$0xf]
    %v2332 = vld [vmem:[%s2330 + $0x4] sm:$0xf]
    %v2333 = vld [vmem:[%s2330 + $0x8] sm:$0xf]
    %v2334 = vld [vmem:[%s2330 + $0xc] sm:$0xf]
    %v2335 = vld [vmem:[%s2330 + $0x10] sm:$0xf]
    %v2336 = vld [vmem:[%s2330 + $0x14] sm:$0xf]
    %v2337 = vld [vmem:[%s2330 + $0x18] sm:$0xf]
    %v2338 = vld [vmem:[%s2330 + $0x1c] sm:$0xf]
    %v2339 = vld [vmem:[%s2330 + $0x20] sm:$0xf]
    %v2340 = vld [vmem:[%s2330 + $0x24] sm:$0xf]
    %v2341 = vld [vmem:[%s2330 + $0x28] sm:$0xf]
    %v2342 = vld [vmem:[%s2330 + $0x2c] sm:$0xf]
    %v2343 = vld [vmem:[%s2330 + $0x30] sm:$0xf]
    %v2344 = vld [vmem:[%s2330 + $0x34] sm:$0xf]
    %v2345 = vld [vmem:[%s2330 + $0x38] sm:$0xf]
    %v2346 = vld [vmem:[%s2330 + $0x3c] sm:$0xf]
    %v2347 = vld [vmem:[%s2 + $0x9] sm:$0x1]
    %v2348 = vlaneseq
    %v2349 = vshrl.u32 %v2348, 7
    %v2350 = vsub.s32 0, %v2349
    %v2351 = vrot.slane %v2347, %v2350
    %v2368 = vunpack.c.l.b16 %v2331
    %v2369 = vunpack.c.l.b16 %v2332
    %v2370 = vunpack.c.l.b16 %v2333
    %v2371 = vunpack.c.l.b16 %v2334
    %v2372 = vunpack.c.l.b16 %v2335
    %v2373 = vunpack.c.l.b16 %v2336
    %v2374 = vunpack.c.l.b16 %v2337
    %v2375 = vunpack.c.l.b16 %v2338
    %v2376 = vunpack.c.l.b16 %v2339
    %v2377 = vunpack.c.l.b16 %v2340
    %v2378 = vunpack.c.l.b16 %v2341
    %v2379 = vunpack.c.l.b16 %v2342
    %v2380 = vunpack.c.l.b16 %v2343
    %v2381 = vunpack.c.l.b16 %v2344
    %v2382 = vunpack.c.l.b16 %v2345
    %v2383 = vunpack.c.l.b16 %v2346
    %v2384 = vpack.c.b16 %v2369, %v2368
    %v2385 = vpack.c.b16 %v2371, %v2370
    %v2386 = vpack.c.b16 %v2373, %v2372
    %v2387 = vpack.c.b16 %v2375, %v2374
    %v2388 = vpack.c.b16 %v2377, %v2376
    %v2389 = vpack.c.b16 %v2379, %v2378
    %v2390 = vpack.c.b16 %v2381, %v2380
    %v2391 = vpack.c.b16 %v2383, %v2382
    %2400 = vmatprep.subr.bf16.mxu0 0
    %2401 = vmatpush1.bf16.msra.mxu0 %v2391
    %2402 = vmatprep.subr.bf16.mxu0 0
    %2403 = vmatpush1.bf16.msra.mxu0 %v2390
    %2404 = vmatprep.subr.bf16.mxu0 0
    %2405 = vmatpush1.bf16.msra.mxu0 %v2389
    %2406 = vmatprep.subr.bf16.mxu0 0
    %2407 = vmatpush1.bf16.msra.mxu0 %v2388
    %2408 = vmatprep.subr.bf16.mxu0 0
    %2409 = vmatpush1.bf16.msra.mxu0 %v2387
    %2410 = vmatprep.subr.bf16.mxu0 0
    %2411 = vmatpush1.bf16.msra.mxu0 %v2386
    %2412 = vmatprep.subr.bf16.mxu0 0
    %2413 = vmatpush1.bf16.msra.mxu0 %v2385
    %2414 = vmatprep.subr.bf16.mxu0 0
    %2415 = vmatpush1.bf16.msra.mxu0 %v2384
    %2416 = vmatprep.subr.bf16.mxu0 0
    %2417 = vmatpush2.bf16.msra.mxu0 0
    %2418 = vmatprep.subr.bf16.mxu0 0
    %2419 = vmatpush2.bf16.msra.mxu0 0
    %2420 = vmatprep.subr.bf16.mxu0 0
    %2421 = vmatpush2.bf16.msra.mxu0 0
    %2422 = vmatprep.subr.bf16.mxu0 0
    %2423 = vmatpush2.bf16.msra.mxu0 0
    %2424 = vmatprep.subr.bf16.mxu0 0
    %2425 = vmatpush2.bf16.msra.mxu0 0
    %2426 = vmatprep.subr.bf16.mxu0 0
    %2427 = vmatpush2.bf16.msra.mxu0 0
    %2428 = vmatprep.subr.bf16.mxu0 0
    %2429 = vmatpush2.bf16.msra.mxu0 0
    %2430 = vmatprep.subr.bf16.mxu0 0
    %2431 = vmatpush2.bf16.msra.mxu0 0
    %2432 = vmatprep.mubr.bf16.mxu0 0
    %2433 = vmatmul.mubr.bf16.gmra.mxu0 %v2319
    %v2434 = vpop.f32.mrf.mxu0
    %v2435 = vadd.f32 %v2351, %v2434
    %v2436 = vpop.f32.mrf.mxu0
    %v2437 = vpop.f32.mrf.mxu0
    %v2438 = vadd.f32 %v2351, %v2437
    %v2439 = vpop.f32.mrf.mxu0
    %2440 = vmatprep.mubr.bf16.mxu0 0
    %2441 = vmatmul.mubr.bf16.gmra.mxu0 %v2320
    %v2442 = vpop.f32.mrf.mxu0
    %v2443 = vadd.f32 %v2351, %v2442
    %v2444 = vpop.f32.mrf.mxu0
    %v2445 = vpop.f32.mrf.mxu0
    %v2446 = vadd.f32 %v2351, %v2445
    %v2447 = vpop.f32.mrf.mxu0
    %2448 = vmatprep.mubr.bf16.mxu0 0
    %2449 = vmatmul.mubr.bf16.gmra.mxu0 %v2321
    %v2450 = vpop.f32.mrf.mxu0
    %v2451 = vadd.f32 %v2351, %v2450
    %v2452 = vpop.f32.mrf.mxu0
    %v2453 = vpop.f32.mrf.mxu0
    %v2454 = vadd.f32 %v2351, %v2453
    %v2455 = vpop.f32.mrf.mxu0
    %2456 = vmatprep.mubr.bf16.mxu0 0
    %2457 = vmatmul.mubr.bf16.gmra.mxu0 %v2322
    %v2458 = vpop.f32.mrf.mxu0
    %v2459 = vadd.f32 %v2351, %v2458
    %v2460 = vpop.f32.mrf.mxu0
    %v2461 = vpop.f32.mrf.mxu0
    %v2462 = vadd.f32 %v2351, %v2461
    %v2463 = vpop.f32.mrf.mxu0
    %2464 = vmatprep.mubr.bf16.mxu0 0
    %2465 = vmatmul.mubr.bf16.gmra.mxu0 %v2323
    %v2466 = vpop.f32.mrf.mxu0
    %v2467 = vadd.f32 %v2351, %v2466
    %v2468 = vpop.f32.mrf.mxu0
    %v2469 = vpop.f32.mrf.mxu0
    %v2470 = vadd.f32 %v2351, %v2469
    %v2471 = vpop.f32.mrf.mxu0
    %2472 = vmatprep.mubr.bf16.mxu0 0
    %2473 = vmatmul.mubr.bf16.gmra.mxu0 %v2324
    %v2474 = vpop.f32.mrf.mxu0
    %v2475 = vadd.f32 %v2351, %v2474
    %v2476 = vpop.f32.mrf.mxu0
    %v2477 = vpop.f32.mrf.mxu0
    %v2478 = vadd.f32 %v2351, %v2477
    %v2479 = vpop.f32.mrf.mxu0
    %2480 = vmatprep.mubr.bf16.mxu0 0
    %2481 = vmatmul.mubr.bf16.gmra.mxu0 %v2325
    %v2482 = vpop.f32.mrf.mxu0
    %v2483 = vadd.f32 %v2351, %v2482
    %v2484 = vpop.f32.mrf.mxu0
    %v2485 = vpop.f32.mrf.mxu0
    %v2486 = vadd.f32 %v2351, %v2485
    %v2487 = vpop.f32.mrf.mxu0
    %2488 = vmatprep.mubr.bf16.mxu0 0
    %2489 = vmatmul.mubr.bf16.gmra.mxu0 %v2326
    %v2490 = vpop.f32.mrf.mxu0
    %v2491 = vadd.f32 %v2351, %v2490
    %v2492 = vpop.f32.mrf.mxu0
    %v2493 = vpop.f32.mrf.mxu0
    %v2494 = vadd.f32 %v2351, %v2493
    %v2495 = vpop.f32.mrf.mxu0
    %2496 = vmatprep.mubr.bf16.mxu0 0
    %2497 = vmatmul.mubr.bf16.gmra.mxu0 %v2327
    %v2498 = vpop.f32.mrf.mxu0
    %v2499 = vadd.f32 %v2351, %v2498
    %v2500 = vpop.f32.mrf.mxu0
    %v2501 = vpop.f32.mrf.mxu0
    %v2502 = vadd.f32 %v2351, %v2501
    %v2503 = vpop.f32.mrf.mxu0
    %2504 = vmatprep.mubr.bf16.mxu0 0
    %2505 = vmatmul.mubr.bf16.gmra.mxu0 %v2328
    %v2506 = vpop.f32.mrf.mxu0
    %v2507 = vadd.f32 %v2351, %v2506
    %v2508 = vpop.f32.mrf.mxu0
    %v2509 = vpop.f32.mrf.mxu0
    %v2510 = vadd.f32 %v2351, %v2509
    %v2511 = vpop.f32.mrf.mxu0
    %2512 = vmatprep.mubr.bf16.mxu0 0
    %2513 = vmatmul.mubr.bf16.gmra.mxu0 %v2329
    %v2514 = vpop.f32.mrf.mxu0
    %v2515 = vadd.f32 %v2351, %v2514
    %v2516 = vpop.f32.mrf.mxu0
    %v2517 = vpop.f32.mrf.mxu0
    %v2518 = vadd.f32 %v2351, %v2517
    %v2519 = vpop.f32.mrf.mxu0
    %2520 = vdwg.mxu0
    %2521 = vst [vmem:[%s3] sm:$0xff] %v2435
    %2522 = vst [vmem:[%s3 + $0x8] sm:$0xff] %v2438
    %2523 = vst [vmem:[%s3 + $0x10] sm:$0xff] %v2443
    %2524 = vst [vmem:[%s3 + $0x18] sm:$0xff] %v2446
    %2525 = vst [vmem:[%s3 + $0x20] sm:$0xff] %v2451
    %2526 = vst [vmem:[%s3 + $0x28] sm:$0xff] %v2454
    %2527 = vst [vmem:[%s3 + $0x30] sm:$0xff] %v2459
    %2528 = vst [vmem:[%s3 + $0x38] sm:$0xff] %v2462
    %2529 = vst [vmem:[%s3 + $0x40] sm:$0xff] %v2467
    %2530 = vst [vmem:[%s3 + $0x48] sm:$0xff] %v2470
    %2531 = vst [vmem:[%s3 + $0x50] sm:$0xff] %v2475
    %2532 = vst [vmem:[%s3 + $0x58] sm:$0xff] %v2478
    %2533 = vst [vmem:[%s3 + $0x60] sm:$0xff] %v2483
    %2534 = vst [vmem:[%s3 + $0x68] sm:$0xff] %v2486
    %2535 = vst [vmem:[%s3 + $0x70] sm:$0xff] %v2491
    %2536 = vst [vmem:[%s3 + $0x78] sm:$0xff] %v2494
    %2537 = vst [vmem:[%s3 + $0x80] sm:$0xff] %v2499
    %2538 = vst [vmem:[%s3 + $0x88] sm:$0xff] %v2502
    %2539 = vst [vmem:[%s3 + $0x90] sm:$0xff] %v2507
    %2540 = vst [vmem:[%s3 + $0x98] sm:$0xff] %v2510
    %2541 = vst [vmem:[%s3 + $0xa0] sm:$0xff] %v2515
    %2542 = vst [vmem:[%s3 + $0xa8] sm:$0xff] %v2518
    // Predicated region
    $region18: #{forward.1} parent=1 // pred_check
      _
    $region19: #{forward.1} parent=1 // pred_check_branch
      %2544 = sbr.rel (0) target = $region21
    $region20: #{forward.1} parent=1 // pred_region
      _
    $region21: #{forward.1} parent=1 // pred_fallthru
      _
    // Predicated region
    $region22: #{forward.1} parent=1 // pred_check
      _
    $region23: #{forward.1} parent=1 // pred_check_branch
      %2546 = sbr.rel (0) target = $region25
    $region24: #{forward.1} parent=1 // pred_region
      _
    $region25: #{forward.1} parent=1 // pred_fallthru
      _
    %2547 = vsyncpa [#allocation3], 1

</llo_original>
